<compile_context>
chip_gen: v7x
topology: tpu7x:2x2x1
jax: 0.10.0
libtpu: 0.0.40
codegen_flags: <defaults>
</compile_context>

<pallas_src>
import functools
import math

import jax
import jax.numpy as jnp
import numpy as np
from jax import lax
from jax.experimental import pallas as pl
from jax.experimental.pallas import tpu as pltpu

K_REAL = 6   # full map + five crops
K_PAD = 8    # padded to the sublane tile


def _round_up(x, m):
    return ((x + m - 1) // m) * m


def _pad2(a, shape):
    out = jnp.zeros(shape, a.dtype)
    return out.at[: a.shape[0], : a.shape[1]].set(a)


# ---------------------------------------------------------------------------
# Static crop geometry (torchvision five_crop) -> (K_PAD, H*W) avg-pool weights
# ---------------------------------------------------------------------------
def five_crop_params(h, w):
    # PyTorch: crop_size = [ceil(W*2/3), ceil(H*2/3)]; five_crop(size=crop_size)
    ch = math.ceil(w * (2.0 / 3.0))   # crop height = size[0]
    cw = math.ceil(h * (2.0 / 3.0))   # crop width  = size[1]
    ct = int(round((h - ch) / 2.0))
    cl = int(round((w - cw) / 2.0))
    return [
        (0, 0, h, w),                 # full (un-cropped) feature map
        (0, 0, ch, cw),               # top-left
        (0, w - cw, ch, cw),          # top-right
        (h - ch, 0, ch, cw),          # bottom-left
        (h - ch, w - cw, ch, cw),     # bottom-right
        (ct, cl, ch, cw),             # center
    ]


def build_crop_weights(h, w):
    """(K_PAD, H*W); row k = mask(crop k)/area(crop k); rows >= 6 are zero."""
    rows = np.arange(h)[:, None]
    cols = np.arange(w)[None, :]
    mats = []
    for (t, l, ch, cw_) in five_crop_params(h, w):
        m = (rows >= t) & (rows < t + ch) & (cols >= l) & (cols < l + cw_)
        mats.append(m.astype(np.float64) / float(ch * cw_))
    arr = np.stack(mats, 0).reshape(len(mats), h * w)
    out = np.zeros((K_PAD, h * w), np.float32)
    out[: arr.shape[0]] = arr
    return jnp.asarray(out)


# ---------------------------------------------------------------------------
# Fused kernel: VPU conv+ReLU -> MXU crop pool -> GCN -> masked node mean
# ---------------------------------------------------------------------------
def _fused_kernel(x_ref, wT_ref, b_ref, cw_ref, wg_ref, bg_ref, o_ref,
                  *, scale, cin, k_real):
    tn = x_ref.shape[0]
    hw = x_ref.shape[2]
    cf_p = wT_ref.shape[0]
    k_p = cw_ref.shape[0]
    co_p = wg_ref.shape[1]

    # -- 1) pointwise conv + bias + ReLU on the VPU.  Cin is tiny (4), so an
    #       MXU matmul would contract K=Cin zero-padded to 128/256.  Unrolled
    #       broadcast multiply-adds keep the MXU free for the pool/graph.
    xv = x_ref[...].astype(jnp.float32)                              # (tn,cin,hw)
    wv = wT_ref[...].astype(jnp.float32)                             # (cf_p,cin)
    acc = jnp.broadcast_to(b_ref[...][None, :, :], (tn, cf_p, hw))   # bias
    for c in range(cin):                                             # static
        xc = xv[:, c:c + 1, :]                                       # (tn,1,hw)
        wc = wv[:, c:c + 1][None, :, :]                              # (1,cf_p,1)
        acc = acc + xc * wc                                          # VPU
    feat = jnp.maximum(acc, 0.0).astype(jnp.bfloat16)                # (tn,cf_p,hw)

    # -- 2) crop + adaptive-avg-pool: contract HW (lane axis of both operands,
    #       flash-attention-style A.B^T batched matmul on the MXU).
    #       cw broadcast is ~8*HW*tn bf16 (tiny) and keeps a proven pattern.
    cw_b = jnp.broadcast_to(cw_ref[...][None], (tn, k_p, hw))        # bf16
    xs = jnp.einsum("nks,nfs->nkf", cw_b, feat,
                    preferred_element_type=jnp.float32)              # (tn,k_p,cf_p)

    # -- 3) GraphModule: similarity-softmax GCN over the K view nodes.
    xs_b = xs.astype(jnp.bfloat16)
    s = jnp.einsum("nkf,njf->nkj", xs_b, xs_b,
                   preferred_element_type=jnp.float32) * scale       # (tn,k_p,k_p)
    col = lax.broadcasted_iota(jnp.int32, (1, 1, k_p), 2)
    s = jnp.where(col < k_real, s, jnp.float32(-1e30))               # mask pad nodes
    s = s - jnp.max(s, axis=-1, keepdims=True)
    e = jnp.exp(s)
    denom = jnp.sum(e, axis=-1, keepdims=True)
    r = pl.reciprocal(denom, approx=True)        # EUP slot (nearly free)
    r = r * (2.0 - denom * r)                    # one Newton step (denom >= 1)
    a = (e * r).astype(jnp.bfloat16)
    agg = jnp.einsum("nkj,njf->nkf", a, xs_b,
                     preferred_element_type=jnp.float32)             # (tn,k_p,cf_p)

    hgc = jnp.dot(agg.reshape(tn * k_p, cf_p).astype(jnp.bfloat16), wg_ref[...],
                  preferred_element_type=jnp.float32)
    hgc = jnp.maximum(hgc + bg_ref[...], 0.0).reshape(tn, k_p, co_p)

    # mean over the 6 REAL nodes only (padded node rows carry non-zero junk).
    row = lax.broadcasted_iota(jnp.int32, (1, k_p, 1), 1)
    row_mask = (row < k_real).astype(jnp.float32)
    o_ref[...] = (jnp.sum(hgc * row_mask, axis=1)
                  * (1.0 / float(k_real))).astype(o_ref.dtype)


def _pick_tn(n, tn_cap):
    if n <= 8:
        return n                       # block dim == full dim -> valid
    # >=2 grid steps so the "parallel" batch axis shards across v7x's 2 TCs
    # and DMA pipelines with compute.  tn is a multiple of 8 (output sublanes).
    return min(tn_cap, _round_up(-(-n // 2), 8))


def model_forward(x_nchw, params, *, tn_cap=32):
    # tn_cap: sweep per chip (v6e up to 64/96 with a larger vmem limit;
    # keep <=32 on v5e / v7x at these HW / Cf sizes).
    n, cin, h, w = x_nchw.shape
    cfeat = params["w_feat"].shape[1]
    cout = params["w_graph"].shape[1]
    # TODO(synk): pad to multiples of 256 on v6e/v7x once channels exceed 128.
    cf_p = _round_up(cfeat, 128)
    co_p = _round_up(cout, 128)
    hw = h * w

    # Plain reshape of NCHW -> (N, Cin, H*W): no host transpose / HBM
    # round-trip; H*W lands on the lane axis of the x block.
    x = x_nchw.reshape(n, cin, hw)

    # Zero-pad channel dims to 128 lanes (numerically exact: zeros pass
    # through relu, pooling, similarity and matmuls; output sliced back).
    w_featT = jnp.zeros((cf_p, cin), jnp.float32).at[:cfeat, :].set(
        jnp.transpose(params["w_feat"]))                       # (cf_p, cin)
    b_feat_col = jnp.zeros((cf_p, 1), jnp.float32).at[:cfeat, 0].set(
        params["b_feat"][0])                                   # (cf_p, 1)
    w_graph = _pad2(params["w_graph"], (cf_p, co_p)).astype(jnp.bfloat16)
    b_graph = _pad2(params["b_graph"], (1, co_p))              # f32
    crop_w = build_crop_weights(h, w).astype(jnp.bfloat16)     # (K_PAD, hw)

    scale = 1.0 / math.sqrt(cfeat)     # similarity scale uses the TRUE C

    tn = _pick_tn(n, tn_cap)
    grid = (pl.cdiv(n, tn),)

    kernel = functools.partial(_fused_kernel, scale=scale, cin=cin,
                               k_real=K_REAL)
    out = pl.pallas_call(
        kernel,
        out_shape=jax.ShapeDtypeStruct((n, co_p), x_nchw.dtype),
        grid_spec=pltpu.PrefetchScalarGridSpec(
            num_scalar_prefetch=0,
            grid=grid,
            in_specs=[
                pl.BlockSpec((tn, cin, hw), lambda i: (i, 0, 0)),
                pl.BlockSpec((cf_p, cin), lambda i: (0, 0)),
                pl.BlockSpec((cf_p, 1), lambda i: (0, 0)),
                pl.BlockSpec((K_PAD, hw), lambda i: (0, 0)),
                pl.BlockSpec((cf_p, co_p), lambda i: (0, 0)),
                pl.BlockSpec((1, co_p), lambda i: (0, 0)),
            ],
            out_specs=pl.BlockSpec((tn, co_p), lambda i: (i, 0)),
        ),
        compiler_params=pltpu.CompilerParams(
            dimension_semantics=("parallel",),
            vmem_limit_bytes=32 * 1024 * 1024,
        ),
    )(x, w_featT, b_feat_col, crop_w, w_graph, b_graph)

    return out[:, :cout]


# ---------------------------------------------------------------------------
# Pure-JAX f32 reference (correctness check only; un-padded params, 6 nodes)
# ---------------------------------------------------------------------------
def reference_forward(x_nchw, params):
    x = jnp.transpose(x_nchw, (0, 2, 3, 1))
    feats = jnp.maximum(
        jnp.einsum("nhwc,cf->nhwf", x, params["w_feat"]) + params["b_feat"][0], 0.0
    )
    _, h, w, cf = feats.shape
    pooled = []
    for (t, l, ch, cw) in five_crop_params(h, w):
        pooled.append(jnp.mean(feats[:, t:t + ch, l:l + cw, :], axis=(1, 2)))
    stack = jnp.stack(pooled, axis=0)                    # (6, N, Cf)
    xs = jnp.transpose(stack, (1, 0, 2))                 # (N, 6, Cf)
    s = jnp.einsum("nkc,njc->nkj", xs, xs) / jnp.sqrt(jnp.float32(cf))
    a = jax.nn.softmax(s, axis=-1)
    agg = jnp.einsum("nkj,njc->nkc", a, xs)
    hgc = jnp.maximum(
        jnp.einsum("nkc,cf->nkf", agg, params["w_graph"]) + params["b_graph"][0], 0.0
    )
    return jnp.mean(hgc, axis=1)


if __name__ == "__main__":
    N, C_IN, H, W = 2, 4, 16, 16          # input image-like tensor
    C_FEAT = 32                            # backbone feature channels == GraphModule in_channels
    C_OUT = 32                             # graph output channels

    key = jax.random.PRNGKey(0)
    kx, kw1, kb1, kw2, kb2 = jax.random.split(key, 5)

    x = jax.random.normal(kx, (N, C_IN, H, W), dtype=jnp.float32)
    params = {
        "w_feat": 0.1 * jax.random.normal(kw1, (C_IN, C_FEAT), dtype=jnp.float32),
        "b_feat": 0.01 * jax.random.normal(kb1, (1, C_FEAT), dtype=jnp.float32),
        "w_graph": 0.1 * jax.random.normal(kw2, (C_FEAT, C_OUT), dtype=jnp.float32),
        "b_graph": 0.01 * jax.random.normal(kb2, (1, C_OUT), dtype=jnp.float32),
    }

    out = jax.block_until_ready(model_forward(x, params))
    ref = jax.block_until_ready(reference_forward(x, params))

    assert out.shape == (N, C_OUT), out.shape
    err = float(jnp.max(jnp.abs(out - ref)))
    # bf16 MXU operands (f32 accumulation / f32 softmax) vs. pure-f32 reference.
    assert err < 2e-2, err

    print("KERNEL_OK")
</pallas_src>

<mosaic_0001>
module attributes {stable_mosaic.version = 11 : i64} {
  func.func @_fused_kernel(%arg0: i32, %arg1: memref<2x4x256xf32, #tpu.memory_space<vmem>>, %arg2: memref<128x4xf32, #tpu.memory_space<vmem>>, %arg3: memref<128x1xf32, #tpu.memory_space<vmem>>, %arg4: memref<8x256xbf16, #tpu.memory_space<vmem>>, %arg5: memref<128x128xbf16, #tpu.memory_space<vmem>>, %arg6: memref<1x128xf32, #tpu.memory_space<vmem>>, %arg7: memref<2x128xf32, #tpu.memory_space<vmem>>) attributes {dimension_semantics = [#tpu.dimension_semantics<parallel>], iteration_bounds = array<i64: 1>, scalar_prefetch = 0 : i64, scratch_operands = 0 : i64, tpu.core_type = #tpu.core_type<tc>, window_params = [{transform_indices = @transform_0, window_bounds = array<i64: 2, 4, 256>}, {pipeline_mode = #tpu.pipeline_mode<synchronous>, transform_indices = @transform_1, window_bounds = array<i64: 128, 4>}, {pipeline_mode = #tpu.pipeline_mode<synchronous>, transform_indices = @transform_2, window_bounds = array<i64: 128, 1>}, {pipeline_mode = #tpu.pipeline_mode<synchronous>, transform_indices = @transform_3, window_bounds = array<i64: 8, 256>}, {pipeline_mode = #tpu.pipeline_mode<synchronous>, transform_indices = @transform_4, window_bounds = array<i64: 128, 128>}, {pipeline_mode = #tpu.pipeline_mode<synchronous>, transform_indices = @transform_5, window_bounds = array<i64: 1, 128>}, {transform_indices = @transform_6, window_bounds = array<i64: 2, 128>}]} {
    %c0 = arith.constant 0 : index
    %c0_0 = arith.constant 0 : index
    %c0_1 = arith.constant 0 : index
    %0 = vector.load %arg1[%c0, %c0_0, %c0_1] : memref<2x4x256xf32, #tpu.memory_space<vmem>>, vector<2x4x256xf32>
    %c0_2 = arith.constant 0 : index
    %c0_3 = arith.constant 0 : index
    %1 = vector.load %arg2[%c0_2, %c0_3] : memref<128x4xf32, #tpu.memory_space<vmem>>, vector<128x4xf32>
    %c0_4 = arith.constant 0 : index
    %c0_5 = arith.constant 0 : index
    %2 = vector.load %arg3[%c0_4, %c0_5] : memref<128x1xf32, #tpu.memory_space<vmem>>, vector<128x1xf32>
    %3 = vector.shape_cast %2 : vector<128x1xf32> to vector<1x128x1xf32>
    %4 = vector.shape_cast %3 : vector<1x128x1xf32> to vector<1x128x1xf32>
    %5 = vector.broadcast %4 : vector<1x128x1xf32> to vector<2x128x256xf32>
    %6 = vector.extract_strided_slice %0 {offsets = [0, 0, 0], sizes = [2, 1, 256], strides = [1, 1, 1]} : vector<2x4x256xf32> to vector<2x1x256xf32>
    %7 = vector.extract_strided_slice %1 {offsets = [0, 0], sizes = [128, 1], strides = [1, 1]} : vector<128x4xf32> to vector<128x1xf32>
    %8 = vector.shape_cast %7 : vector<128x1xf32> to vector<1x128x1xf32>
    %9 = vector.broadcast %6 : vector<2x1x256xf32> to vector<2x128x256xf32>
    %10 = vector.broadcast %8 : vector<1x128x1xf32> to vector<2x128x256xf32>
    %11 = arith.mulf %9, %10 : vector<2x128x256xf32>
    %12 = arith.addf %5, %11 : vector<2x128x256xf32>
    %13 = vector.extract_strided_slice %0 {offsets = [0, 1, 0], sizes = [2, 1, 256], strides = [1, 1, 1]} : vector<2x4x256xf32> to vector<2x1x256xf32>
    %14 = vector.extract_strided_slice %1 {offsets = [0, 1], sizes = [128, 1], strides = [1, 1]} : vector<128x4xf32> to vector<128x1xf32>
    %15 = vector.shape_cast %14 : vector<128x1xf32> to vector<1x128x1xf32>
    %16 = vector.broadcast %13 : vector<2x1x256xf32> to vector<2x128x256xf32>
    %17 = vector.broadcast %15 : vector<1x128x1xf32> to vector<2x128x256xf32>
    %18 = arith.mulf %16, %17 : vector<2x128x256xf32>
    %19 = arith.addf %12, %18 : vector<2x128x256xf32>
    %20 = vector.extract_strided_slice %0 {offsets = [0, 2, 0], sizes = [2, 1, 256], strides = [1, 1, 1]} : vector<2x4x256xf32> to vector<2x1x256xf32>
    %21 = vector.extract_strided_slice %1 {offsets = [0, 2], sizes = [128, 1], strides = [1, 1]} : vector<128x4xf32> to vector<128x1xf32>
    %22 = vector.shape_cast %21 : vector<128x1xf32> to vector<1x128x1xf32>
    %23 = vector.broadcast %20 : vector<2x1x256xf32> to vector<2x128x256xf32>
    %24 = vector.broadcast %22 : vector<1x128x1xf32> to vector<2x128x256xf32>
    %25 = arith.mulf %23, %24 : vector<2x128x256xf32>
    %26 = arith.addf %19, %25 : vector<2x128x256xf32>
    %27 = vector.extract_strided_slice %0 {offsets = [0, 3, 0], sizes = [2, 1, 256], strides = [1, 1, 1]} : vector<2x4x256xf32> to vector<2x1x256xf32>
    %28 = vector.extract_strided_slice %1 {offsets = [0, 3], sizes = [128, 1], strides = [1, 1]} : vector<128x4xf32> to vector<128x1xf32>
    %29 = vector.shape_cast %28 : vector<128x1xf32> to vector<1x128x1xf32>
    %30 = vector.broadcast %27 : vector<2x1x256xf32> to vector<2x128x256xf32>
    %31 = vector.broadcast %29 : vector<1x128x1xf32> to vector<2x128x256xf32>
    %32 = arith.mulf %30, %31 : vector<2x128x256xf32>
    %33 = arith.addf %26, %32 : vector<2x128x256xf32>
    %cst = arith.constant 0.000000e+00 : f32
    %34 = vector.broadcast %cst : f32 to vector<2x128x256xf32>
    %35 = arith.maximumf %33, %34 : vector<2x128x256xf32>
    %36 = arith.truncf %35 : vector<2x128x256xf32> to vector<2x128x256xbf16>
    %c0_6 = arith.constant 0 : index
    %c0_7 = arith.constant 0 : index
    %37 = vector.load %arg4[%c0_6, %c0_7] : memref<8x256xbf16, #tpu.memory_space<vmem>>, vector<8x256xbf16>
    %38 = vector.shape_cast %37 : vector<8x256xbf16> to vector<1x8x256xbf16>
    %39 = vector.shape_cast %38 : vector<1x8x256xbf16> to vector<1x8x256xbf16>
    %40 = vector.broadcast %39 : vector<1x8x256xbf16> to vector<2x8x256xbf16>
    "tpu.trace_start"() <{level = 10 : i32, message = "nks,nfs->nkf"}> : () -> ()
    %cst_8 = arith.constant dense<0.000000e+00> : vector<2x8x128xf32>
    %41 = tpu.matmul %40, %36, %cst_8 {dimension_numbers = #tpu.dot_dimension_numbers<[2], [2], [1], [1], [0, 0, 0, 1, 1, 1], [0], [0]>} : vector<2x8x256xbf16>, vector<2x128x256xbf16>, vector<2x8x128xf32> -> vector<2x8x128xf32>
    "tpu.trace_stop"() : () -> ()
    %42 = arith.truncf %41 : vector<2x8x128xf32> to vector<2x8x128xbf16>
    "tpu.trace_start"() <{level = 10 : i32, message = "nkf,njf->nkj"}> : () -> ()
    %cst_9 = arith.constant dense<0.000000e+00> : vector<2x8x8xf32>
    %43 = tpu.matmul %42, %42, %cst_9 {dimension_numbers = #tpu.dot_dimension_numbers<[2], [2], [1], [1], [0, 0, 0, 1, 1, 1], [0], [0]>} : vector<2x8x128xbf16>, vector<2x8x128xbf16>, vector<2x8x8xf32> -> vector<2x8x8xf32>
    "tpu.trace_stop"() : () -> ()
    %cst_10 = arith.constant 0.176776692 : f32
    %44 = vector.broadcast %cst_10 : f32 to vector<2x8x8xf32>
    %45 = arith.mulf %43, %44 : vector<2x8x8xf32>
    %46 = tpu.iota {dimensions = array<i32: 2>} : vector<1x1x8xi32>
    %c6_i32 = arith.constant 6 : i32
    %47 = vector.broadcast %c6_i32 : i32 to vector<1x1x8xi32>
    %48 = arith.cmpi slt, %46, %47 : vector<1x1x8xi32>
    %cst_11 = arith.constant -1.000000e+30 : f32
    %49 = vector.shape_cast %48 : vector<1x1x8xi1> to vector<1x1x8xi1>
    %50 = vector.broadcast %49 : vector<1x1x8xi1> to vector<2x8x8xi1>
    %51 = vector.broadcast %cst_11 : f32 to vector<2x8x8xf32>
    %52 = arith.select %50, %45, %51 : vector<2x8x8xi1>, vector<2x8x8xf32>
    %cst_12 = arith.constant dense<0xFF800000> : vector<2x8xf32>
    %53 = vector.multi_reduction <maximumf>, %52, %cst_12 [2] : vector<2x8x8xf32> to vector<2x8xf32>
    %54 = vector.shape_cast %53 : vector<2x8xf32> to vector<2x8x1xf32>
    %55 = vector.broadcast %54 : vector<2x8x1xf32> to vector<2x8x8xf32>
    %56 = arith.subf %52, %55 : vector<2x8x8xf32>
    %57 = math.exp %56 : vector<2x8x8xf32>
    %cst_13 = arith.constant dense<0.000000e+00> : vector<2x8xf32>
    %58 = vector.multi_reduction <add>, %57, %cst_13 [2] : vector<2x8x8xf32> to vector<2x8xf32>
    %59 = vector.shape_cast %58 : vector<2x8xf32> to vector<2x8x1xf32>
    %60 = tpu.reciprocal %59 {approx = true} : vector<2x8x1xf32> -> vector<2x8x1xf32>
    %61 = arith.mulf %59, %60 : vector<2x8x1xf32>
    %cst_14 = arith.constant 2.000000e+00 : f32
    %62 = vector.broadcast %cst_14 : f32 to vector<2x8x1xf32>
    %63 = arith.subf %62, %61 : vector<2x8x1xf32>
    %64 = arith.mulf %60, %63 : vector<2x8x1xf32>
    %65 = vector.broadcast %64 : vector<2x8x1xf32> to vector<2x8x8xf32>
    %66 = arith.mulf %57, %65 : vector<2x8x8xf32>
    %67 = arith.truncf %66 : vector<2x8x8xf32> to vector<2x8x8xbf16>
    "tpu.trace_start"() <{level = 10 : i32, message = "nkj,njf->nkf"}> : () -> ()
    %cst_15 = arith.constant dense<0.000000e+00> : vector<2x8x128xf32>
    %68 = tpu.matmul %67, %42, %cst_15 {dimension_numbers = #tpu.dot_dimension_numbers<[2], [1], [1], [2], [0, 0, 0, 1, 1, 2], [0], [0]>} : vector<2x8x8xbf16>, vector<2x8x128xbf16>, vector<2x8x128xf32> -> vector<2x8x128xf32>
    "tpu.trace_stop"() : () -> ()
    %69 = vector.shape_cast %68 : vector<2x8x128xf32> to vector<16x128xf32>
    %70 = arith.truncf %69 : vector<16x128xf32> to vector<16x128xbf16>
    %c0_16 = arith.constant 0 : index
    %c0_17 = arith.constant 0 : index
    %71 = vector.load %arg5[%c0_16, %c0_17] : memref<128x128xbf16, #tpu.memory_space<vmem>>, vector<128x128xbf16>
    %cst_18 = arith.constant dense<0.000000e+00> : vector<16x128xf32>
    %72 = tpu.matmul %70, %71, %cst_18 {dimension_numbers = #tpu.dot_dimension_numbers<[1], [0], [0], [1], [0, 0, 1, 1], [], []>} : vector<16x128xbf16>, vector<128x128xbf16>, vector<16x128xf32> -> vector<16x128xf32>
    %c0_19 = arith.constant 0 : index
    %c0_20 = arith.constant 0 : index
    %73 = vector.load %arg6[%c0_19, %c0_20] : memref<1x128xf32, #tpu.memory_space<vmem>>, vector<1x128xf32>
    %74 = vector.broadcast %73 : vector<1x128xf32> to vector<16x128xf32>
    %75 = arith.addf %72, %74 : vector<16x128xf32>
    %cst_21 = arith.constant 0.000000e+00 : f32
    %76 = vector.broadcast %cst_21 : f32 to vector<16x128xf32>
    %77 = arith.maximumf %75, %76 : vector<16x128xf32>
    %78 = vector.shape_cast %77 : vector<16x128xf32> to vector<2x8x128xf32>
    %79 = tpu.iota {dimensions = array<i32: 1>} : vector<1x8x1xi32>
    %c6_i32_22 = arith.constant 6 : i32
    %80 = vector.broadcast %c6_i32_22 : i32 to vector<1x8x1xi32>
    %81 = arith.cmpi slt, %79, %80 : vector<1x8x1xi32>
    %82 = arith.extui %81 : vector<1x8x1xi1> to vector<1x8x1xi32>
    %83 = arith.sitofp %82 : vector<1x8x1xi32> to vector<1x8x1xf32>
    %84 = vector.broadcast %83 : vector<1x8x1xf32> to vector<2x8x128xf32>
    %85 = arith.mulf %78, %84 : vector<2x8x128xf32>
    %cst_23 = arith.constant dense<0.000000e+00> : vector<2x128xf32>
    %86 = vector.multi_reduction <add>, %85, %cst_23 [1] : vector<2x8x128xf32> to vector<2x128xf32>
    %cst_24 = arith.constant 0.166666672 : f32
    %87 = vector.broadcast %cst_24 : f32 to vector<2x128xf32>
    %88 = arith.mulf %86, %87 : vector<2x128xf32>
    %c0_25 = arith.constant 0 : index
    %c0_26 = arith.constant 0 : index
    %89 = vector.load %arg7[%c0_25, %c0_26] : memref<2x128xf32, #tpu.memory_space<vmem>>, vector<2x128xf32>
    tpu.vector_store %arg7[%c0_25, %c0_26], %88 {strides = array<i32>} : memref<2x128xf32, #tpu.memory_space<vmem>>, vector<2x128xf32>,
    return
  }
  func.func @transform_0(%arg0: i32) -> (i32, i32, i32) {
    %c0_i32 = arith.constant 0 : i32
    %c0_i32_0 = arith.constant 0 : i32
    %c0_i32_1 = arith.constant 0 : i32
    return %arg0, %c0_i32, %c0_i32_0 : i32, i32, i32
  }
  func.func @transform_1(%arg0: i32) -> (i32, i32) {
    %c0_i32 = arith.constant 0 : i32
    %c0_i32_0 = arith.constant 0 : i32
    %c0_i32_1 = arith.constant 0 : i32
    return %c0_i32, %c0_i32_0 : i32, i32
  }
  func.func @transform_2(%arg0: i32) -> (i32, i32) {
    %c0_i32 = arith.constant 0 : i32
    %c0_i32_0 = arith.constant 0 : i32
    %c0_i32_1 = arith.constant 0 : i32
    return %c0_i32, %c0_i32_0 : i32, i32
  }
  func.func @transform_3(%arg0: i32) -> (i32, i32) {
    %c0_i32 = arith.constant 0 : i32
    %c0_i32_0 = arith.constant 0 : i32
    %c0_i32_1 = arith.constant 0 : i32
    return %c0_i32, %c0_i32_0 : i32, i32
  }
  func.func @transform_4(%arg0: i32) -> (i32, i32) {
    %c0_i32 = arith.constant 0 : i32
    %c0_i32_0 = arith.constant 0 : i32
    %c0_i32_1 = arith.constant 0 : i32
    return %c0_i32, %c0_i32_0 : i32, i32
  }
  func.func @transform_5(%arg0: i32) -> (i32, i32) {
    %c0_i32 = arith.constant 0 : i32
    %c0_i32_0 = arith.constant 0 : i32
    %c0_i32_1 = arith.constant 0 : i32
    return %c0_i32, %c0_i32_0 : i32, i32
  }
  func.func @transform_6(%arg0: i32) -> (i32, i32) {
    %c0_i32 = arith.constant 0 : i32
    %c0_i32_0 = arith.constant 0 : i32
    return %arg0, %c0_i32 : i32, i32
  }
}

</mosaic_0001>

<llo_original>
// kernel: tpu_custom_call.1
$region0: #{tpu_custom_call.1}
  #allocation0 [shape = 'u32[]', space=smem, size = 0x4, offset = 0x4, fixed_abs, tag = 'smem constant byte address 0x4 - core index']
  #allocation1 [shape = 'u32[144,128]{1,0:T(1,128)}', space=vmem, size = 0x12000, scoped, tag = 'internal scratch']
  %s0 = inlined_call_operand.vmem [shape: f32[2,4,256], index: 0, kind: input, shape index: {}]
  %s1 = inlined_call_operand.vmem [shape: f32[128,4], index: 1, kind: input, shape index: {}]
  %s2 = inlined_call_operand.vmem [shape: f32[128,1], index: 2, kind: input, shape index: {}]
  %s3 = inlined_call_operand.vmem [shape: bf16[8,256], index: 3, kind: input, shape index: {}]
  %s4 = inlined_call_operand.vmem [shape: bf16[128,128], index: 4, kind: input, shape index: {}]
  %s5 = inlined_call_operand.vmem [shape: f32[1,128], index: 5, kind: input, shape index: {}]
  %s6 = inlined_call_operand.hbm [shape: f32[2,128], index: 6, kind: output, shape index: {}]
  %s7 = sld [smem:[#allocation0]]
  $region34: #{tpu_custom_call.1} parent=0
    _
  %s9 = ssub.s32 1, %s7
  %s10 = scalar_select 0, %s9, %s7
  $region1: #{tpu_custom_call.1} parent=0
    #allocation2 [shape = 'u8[1024]{0}', space=vmem, size = 0x400, scoped, tag = 'output window, operand 0, single buffered']
    #allocation3 [shape = 's32[1]{0}', space=sflag, size = 0x4, scoped, tag = 'scoped memory for tpu_custom_call.1']
    %11 = vsyncpa [#allocation3], 0
    // Predicated region
    $region2: #{tpu_custom_call.1} parent=1 // pred_check
      _
    $region3: #{tpu_custom_call.1} parent=1 // pred_check_branch
      %13 = sbr.rel (0) target = $region5
    $region4: #{tpu_custom_call.1} parent=1 // pred_region
      _
    $region5: #{tpu_custom_call.1} parent=1 // pred_fallthru
      _
    // Predicated region
    $region6: #{tpu_custom_call.1} parent=1 // pred_check
      _
    $region7: #{tpu_custom_call.1} parent=1 // pred_check_branch
      %15 = sbr.rel (0) target = $region9
    $region8: #{tpu_custom_call.1} parent=1 // pred_region
      _
    $region9: #{tpu_custom_call.1} parent=1 // pred_fallthru
      _
    // Predicated region
    $region10: #{tpu_custom_call.1} parent=1 // pred_check
      _
    $region11: #{tpu_custom_call.1} parent=1 // pred_check_branch
      %17 = sbr.rel (0) target = $region13
    $region12: #{tpu_custom_call.1} parent=1 // pred_region
      _
    $region13: #{tpu_custom_call.1} parent=1 // pred_fallthru
      _
    // Predicated region
    $region14: #{tpu_custom_call.1} parent=1 // pred_check
      _
    $region15: #{tpu_custom_call.1} parent=1 // pred_check_branch
      %19 = sbr.rel (0) target = $region17
    $region16: #{tpu_custom_call.1} parent=1 // pred_region
      _
    $region17: #{tpu_custom_call.1} parent=1 // pred_fallthru
      _
    // Predicated region
    $region18: #{tpu_custom_call.1} parent=1 // pred_check
      _
    $region19: #{tpu_custom_call.1} parent=1 // pred_check_branch
      %21 = sbr.rel (0) target = $region21
    $region20: #{tpu_custom_call.1} parent=1 // pred_region
      _
    $region21: #{tpu_custom_call.1} parent=1 // pred_fallthru
      _
    // Predicated region
    $region22: #{tpu_custom_call.1} parent=1 // pred_check
      _
    $region23: #{tpu_custom_call.1} parent=1 // pred_check_branch
      %23 = sbr.rel (0) target = $region25
    $region24: #{tpu_custom_call.1} parent=1 // pred_region
      _
    $region25: #{tpu_custom_call.1} parent=1 // pred_fallthru
      _
    %v25 = vld [vmem:[%s0] sm:$0xff]
    %v26 = vld [vmem:[%s0 + $0x8] sm:$0xff]
    %v27 = vld [vmem:[%s1] sm:$0xff]
    %v28 = vld [vmem:[%s1 + $0x8] sm:$0xff]
    %v29 = vld [vmem:[%s1 + $0x10] sm:$0xff]
    %v30 = vld [vmem:[%s1 + $0x18] sm:$0xff]
    %v31 = vld [vmem:[%s1 + $0x20] sm:$0xff]
    %v32 = vld [vmem:[%s1 + $0x28] sm:$0xff]
    %v33 = vld [vmem:[%s1 + $0x30] sm:$0xff]
    %v34 = vld [vmem:[%s1 + $0x38] sm:$0xff]
    %v35 = vld [vmem:[%s1 + $0x40] sm:$0xff]
    %v36 = vld [vmem:[%s1 + $0x48] sm:$0xff]
    %v37 = vld [vmem:[%s1 + $0x50] sm:$0xff]
    %v38 = vld [vmem:[%s1 + $0x58] sm:$0xff]
    %v39 = vld [vmem:[%s1 + $0x60] sm:$0xff]
    %v40 = vld [vmem:[%s1 + $0x68] sm:$0xff]
    %v41 = vld [vmem:[%s1 + $0x70] sm:$0xff]
    %v42 = vld [vmem:[%s1 + $0x78] sm:$0xff]
    %v43 = vld [vmem:[%s2] sm:$0xff]
    %v44 = vld [vmem:[%s2 + $0x8] sm:$0xff]
    %v45 = vld [vmem:[%s2 + $0x10] sm:$0xff]
    %v46 = vld [vmem:[%s2 + $0x18] sm:$0xff]
    %v47 = vld [vmem:[%s2 + $0x20] sm:$0xff]
    %v48 = vld [vmem:[%s2 + $0x28] sm:$0xff]
    %v49 = vld [vmem:[%s2 + $0x30] sm:$0xff]
    %v50 = vld [vmem:[%s2 + $0x38] sm:$0xff]
    %v51 = vld [vmem:[%s2 + $0x40] sm:$0xff]
    %v52 = vld [vmem:[%s2 + $0x48] sm:$0xff]
    %v53 = vld [vmem:[%s2 + $0x50] sm:$0xff]
    %v54 = vld [vmem:[%s2 + $0x58] sm:$0xff]
    %v55 = vld [vmem:[%s2 + $0x60] sm:$0xff]
    %v56 = vld [vmem:[%s2 + $0x68] sm:$0xff]
    %v57 = vld [vmem:[%s2 + $0x70] sm:$0xff]
    %v58 = vld [vmem:[%s2 + $0x78] sm:$0xff]
    %60 = vset.pattern.permute.xlu0 0
    %61 = vperm.xlu0 %60, %v43
    %v62 = vpop.permute.xlu0 %61
    %65 = vset.pattern.permute.xlu0 0
    %66 = vperm.xlu0 %65, %v44
    %v67 = vpop.permute.xlu0 %66
    %70 = vset.pattern.permute.xlu0 0
    %71 = vperm.xlu0 %70, %v45
    %v72 = vpop.permute.xlu0 %71
    %75 = vset.pattern.permute.xlu0 0
    %76 = vperm.xlu0 %75, %v46
    %v77 = vpop.permute.xlu0 %76
    %80 = vset.pattern.permute.xlu0 0
    %81 = vperm.xlu0 %80, %v47
    %v82 = vpop.permute.xlu0 %81
    %85 = vset.pattern.permute.xlu0 0
    %86 = vperm.xlu0 %85, %v48
    %v87 = vpop.permute.xlu0 %86
    %90 = vset.pattern.permute.xlu0 0
    %91 = vperm.xlu0 %90, %v49
    %v92 = vpop.permute.xlu0 %91
    %95 = vset.pattern.permute.xlu0 0
    %96 = vperm.xlu0 %95, %v50
    %v97 = vpop.permute.xlu0 %96
    %100 = vset.pattern.permute.xlu0 0
    %101 = vperm.xlu0 %100, %v51
    %v102 = vpop.permute.xlu0 %101
    %105 = vset.pattern.permute.xlu0 0
    %106 = vperm.xlu0 %105, %v52
    %v107 = vpop.permute.xlu0 %106
    %110 = vset.pattern.permute.xlu0 0
    %111 = vperm.xlu0 %110, %v53
    %v112 = vpop.permute.xlu0 %111
    %115 = vset.pattern.permute.xlu0 0
    %116 = vperm.xlu0 %115, %v54
    %v117 = vpop.permute.xlu0 %116
    %120 = vset.pattern.permute.xlu0 0
    %121 = vperm.xlu0 %120, %v55
    %v122 = vpop.permute.xlu0 %121
    %125 = vset.pattern.permute.xlu0 0
    %126 = vperm.xlu0 %125, %v56
    %v127 = vpop.permute.xlu0 %126
    %130 = vset.pattern.permute.xlu0 0
    %131 = vperm.xlu0 %130, %v57
    %v132 = vpop.permute.xlu0 %131
    %135 = vset.pattern.permute.xlu0 0
    %136 = vperm.xlu0 %135, %v58
    %v137 = vpop.permute.xlu0 %136
    %v141 = vlaneseq
    %v142 = vshrl.u32 %v141, 7
    %v143 = vsub.s32 0, %v142
    %v144 = vrot.slane %v25, %v143
    %v145 = vlaneseq
    %v146 = vshrl.u32 %v145, 7
    %v147 = vsub.s32 4, %v146
    %v148 = vrot.slane %v25, %v147
    %v149 = vlaneseq
    %v150 = vshrl.u32 %v149, 7
    %v151 = vsub.s32 0, %v150
    %v152 = vrot.slane %v26, %v151
    %v153 = vlaneseq
    %v154 = vshrl.u32 %v153, 7
    %v155 = vsub.s32 4, %v154
    %v156 = vrot.slane %v26, %v155
    %v161 = vlaneseq
    %v162 = vshrl.u32 %v161, 7
    %v163 = vsub.s32 0, %v162
    %v164 = vrot.slane %v144, %v163
    %v165 = vlaneseq
    %v166 = vshrl.u32 %v165, 7
    %v167 = vsub.s32 0, %v166
    %v168 = vrot.slane %v148, %v167
    %v169 = vlaneseq
    %v170 = vshrl.u32 %v169, 7
    %v171 = vsub.s32 0, %v170
    %v172 = vrot.slane %v152, %v171
    %v173 = vlaneseq
    %v174 = vshrl.u32 %v173, 7
    %v175 = vsub.s32 0, %v174
    %v176 = vrot.slane %v156, %v175
    %178 = vset.pattern.permute.xlu0 0
    %179 = vperm.xlu0 %178, %v27
    %v180 = vpop.permute.xlu0 %179
    %183 = vset.pattern.permute.xlu0 0
    %184 = vperm.xlu0 %183, %v28
    %v185 = vpop.permute.xlu0 %184
    %188 = vset.pattern.permute.xlu0 0
    %189 = vperm.xlu0 %188, %v29
    %v190 = vpop.permute.xlu0 %189
    %193 = vset.pattern.permute.xlu0 0
    %194 = vperm.xlu0 %193, %v30
    %v195 = vpop.permute.xlu0 %194
    %198 = vset.pattern.permute.xlu0 0
    %199 = vperm.xlu0 %198, %v31
    %v200 = vpop.permute.xlu0 %199
    %203 = vset.pattern.permute.xlu0 0
    %204 = vperm.xlu0 %203, %v32
    %v205 = vpop.permute.xlu0 %204
    %208 = vset.pattern.permute.xlu0 0
    %209 = vperm.xlu0 %208, %v33
    %v210 = vpop.permute.xlu0 %209
    %213 = vset.pattern.permute.xlu0 0
    %214 = vperm.xlu0 %213, %v34
    %v215 = vpop.permute.xlu0 %214
    %218 = vset.pattern.permute.xlu0 0
    %219 = vperm.xlu0 %218, %v35
    %v220 = vpop.permute.xlu0 %219
    %223 = vset.pattern.permute.xlu0 0
    %224 = vperm.xlu0 %223, %v36
    %v225 = vpop.permute.xlu0 %224
    %228 = vset.pattern.permute.xlu0 0
    %229 = vperm.xlu0 %228, %v37
    %v230 = vpop.permute.xlu0 %229
    %233 = vset.pattern.permute.xlu0 0
    %234 = vperm.xlu0 %233, %v38
    %v235 = vpop.permute.xlu0 %234
    %238 = vset.pattern.permute.xlu0 0
    %239 = vperm.xlu0 %238, %v39
    %v240 = vpop.permute.xlu0 %239
    %243 = vset.pattern.permute.xlu0 0
    %244 = vperm.xlu0 %243, %v40
    %v245 = vpop.permute.xlu0 %244
    %248 = vset.pattern.permute.xlu0 0
    %249 = vperm.xlu0 %248, %v41
    %v250 = vpop.permute.xlu0 %249
    %253 = vset.pattern.permute.xlu0 0
    %254 = vperm.xlu0 %253, %v42
    %v255 = vpop.permute.xlu0 %254
    %v257 = vmul.f32 %v164, %v180
    %v258 = vmul.f32 %v168, %v180
    %v259 = vmul.f32 %v164, %v185
    %v260 = vmul.f32 %v168, %v185
    %v261 = vmul.f32 %v164, %v190
    %v262 = vmul.f32 %v168, %v190
    %v263 = vmul.f32 %v164, %v195
    %v264 = vmul.f32 %v168, %v195
    %v265 = vmul.f32 %v164, %v200
    %v266 = vmul.f32 %v168, %v200
    %v267 = vmul.f32 %v164, %v205
    %v268 = vmul.f32 %v168, %v205
    %v269 = vmul.f32 %v164, %v210
    %v270 = vmul.f32 %v168, %v210
    %v271 = vmul.f32 %v164, %v215
    %v272 = vmul.f32 %v168, %v215
    %v273 = vmul.f32 %v164, %v220
    %v274 = vmul.f32 %v168, %v220
    %v275 = vmul.f32 %v164, %v225
    %v276 = vmul.f32 %v168, %v225
    %v277 = vmul.f32 %v164, %v230
    %v278 = vmul.f32 %v168, %v230
    %v279 = vmul.f32 %v164, %v235
    %v280 = vmul.f32 %v168, %v235
    %v281 = vmul.f32 %v164, %v240
    %v282 = vmul.f32 %v168, %v240
    %v283 = vmul.f32 %v164, %v245
    %v284 = vmul.f32 %v168, %v245
    %v285 = vmul.f32 %v164, %v250
    %v286 = vmul.f32 %v168, %v250
    %v287 = vmul.f32 %v164, %v255
    %v288 = vmul.f32 %v168, %v255
    %v289 = vmul.f32 %v172, %v180
    %v290 = vmul.f32 %v176, %v180
    %v291 = vmul.f32 %v172, %v185
    %v292 = vmul.f32 %v176, %v185
    %v293 = vmul.f32 %v172, %v190
    %v294 = vmul.f32 %v176, %v190
    %v295 = vmul.f32 %v172, %v195
    %v296 = vmul.f32 %v176, %v195
    %v297 = vmul.f32 %v172, %v200
    %v298 = vmul.f32 %v176, %v200
    %v299 = vmul.f32 %v172, %v205
    %v300 = vmul.f32 %v176, %v205
    %v301 = vmul.f32 %v172, %v210
    %v302 = vmul.f32 %v176, %v210
    %v303 = vmul.f32 %v172, %v215
    %v304 = vmul.f32 %v176, %v215
    %v305 = vmul.f32 %v172, %v220
    %v306 = vmul.f32 %v176, %v220
    %v307 = vmul.f32 %v172, %v225
    %v308 = vmul.f32 %v176, %v225
    %v309 = vmul.f32 %v172, %v230
    %v310 = vmul.f32 %v176, %v230
    %v311 = vmul.f32 %v172, %v235
    %v312 = vmul.f32 %v176, %v235
    %v313 = vmul.f32 %v172, %v240
    %v314 = vmul.f32 %v176, %v240
    %v315 = vmul.f32 %v172, %v245
    %v316 = vmul.f32 %v176, %v245
    %v317 = vmul.f32 %v172, %v250
    %v318 = vmul.f32 %v176, %v250
    %v319 = vmul.f32 %v172, %v255
    %v320 = vmul.f32 %v176, %v255
    %v321 = vadd.f32 %v62, %v257
    %v322 = vadd.f32 %v62, %v258
    %v323 = vadd.f32 %v67, %v259
    %v324 = vadd.f32 %v67, %v260
    %v325 = vadd.f32 %v72, %v261
    %v326 = vadd.f32 %v72, %v262
    %v327 = vadd.f32 %v77, %v263
    %v328 = vadd.f32 %v77, %v264
    %v329 = vadd.f32 %v82, %v265
    %v330 = vadd.f32 %v82, %v266
    %v331 = vadd.f32 %v87, %v267
    %v332 = vadd.f32 %v87, %v268
    %v333 = vadd.f32 %v92, %v269
    %v334 = vadd.f32 %v92, %v270
    %v335 = vadd.f32 %v97, %v271
    %v336 = vadd.f32 %v97, %v272
    %v337 = vadd.f32 %v102, %v273
    %v338 = vadd.f32 %v102, %v274
    %v339 = vadd.f32 %v107, %v275
    %v340 = vadd.f32 %v107, %v276
    %v341 = vadd.f32 %v112, %v277
    %v342 = vadd.f32 %v112, %v278
    %v343 = vadd.f32 %v117, %v279
    %v344 = vadd.f32 %v117, %v280
    %v345 = vadd.f32 %v122, %v281
    %v346 = vadd.f32 %v122, %v282
    %v347 = vadd.f32 %v127, %v283
    %v348 = vadd.f32 %v127, %v284
    %v349 = vadd.f32 %v132, %v285
    %v350 = vadd.f32 %v132, %v286
    %v351 = vadd.f32 %v137, %v287
    %v352 = vadd.f32 %v137, %v288
    %v353 = vadd.f32 %v62, %v289
    %v354 = vadd.f32 %v62, %v290
    %v355 = vadd.f32 %v67, %v291
    %v356 = vadd.f32 %v67, %v292
    %v357 = vadd.f32 %v72, %v293
    %v358 = vadd.f32 %v72, %v294
    %v359 = vadd.f32 %v77, %v295
    %v360 = vadd.f32 %v77, %v296
    %v361 = vadd.f32 %v82, %v297
    %v362 = vadd.f32 %v82, %v298
    %v363 = vadd.f32 %v87, %v299
    %v364 = vadd.f32 %v87, %v300
    %v365 = vadd.f32 %v92, %v301
    %v366 = vadd.f32 %v92, %v302
    %v367 = vadd.f32 %v97, %v303
    %v368 = vadd.f32 %v97, %v304
    %v369 = vadd.f32 %v102, %v305
    %v370 = vadd.f32 %v102, %v306
    %v371 = vadd.f32 %v107, %v307
    %v372 = vadd.f32 %v107, %v308
    %v373 = vadd.f32 %v112, %v309
    %v374 = vadd.f32 %v112, %v310
    %v375 = vadd.f32 %v117, %v311
    %v376 = vadd.f32 %v117, %v312
    %v377 = vadd.f32 %v122, %v313
    %v378 = vadd.f32 %v122, %v314
    %v379 = vadd.f32 %v127, %v315
    %v380 = vadd.f32 %v127, %v316
    %v381 = vadd.f32 %v132, %v317
    %v382 = vadd.f32 %v132, %v318
    %v383 = vadd.f32 %v137, %v319
    %v384 = vadd.f32 %v137, %v320
    %v385 = vlaneseq
    %v386 = vshrl.u32 %v385, 7
    %v387 = vsub.s32 1, %v386
    %v388 = vrot.slane %v25, %v387
    %v389 = vlaneseq
    %v390 = vshrl.u32 %v389, 7
    %v391 = vsub.s32 5, %v390
    %v392 = vrot.slane %v25, %v391
    %v393 = vlaneseq
    %v394 = vshrl.u32 %v393, 7
    %v395 = vsub.s32 1, %v394
    %v396 = vrot.slane %v26, %v395
    %v397 = vlaneseq
    %v398 = vshrl.u32 %v397, 7
    %v399 = vsub.s32 5, %v398
    %v400 = vrot.slane %v26, %v399
    %v405 = vlaneseq
    %v406 = vshrl.u32 %v405, 7
    %v407 = vsub.s32 1, %v406
    %v408 = vrot.slane %v388, %v407
    %v409 = vlaneseq
    %v410 = vshrl.u32 %v409, 7
    %v411 = vsub.s32 1, %v410
    %v412 = vrot.slane %v392, %v411
    %v413 = vlaneseq
    %v414 = vshrl.u32 %v413, 7
    %v415 = vsub.s32 1, %v414
    %v416 = vrot.slane %v396, %v415
    %v417 = vlaneseq
    %v418 = vshrl.u32 %v417, 7
    %v419 = vsub.s32 1, %v418
    %v420 = vrot.slane %v400, %v419
    %421 = vset.pattern.permute.xlu0 1
    %422 = vperm.xlu0 %421, %v27
    %v423 = vpop.permute.xlu0 %422
    %425 = vset.pattern.permute.xlu0 1
    %426 = vperm.xlu0 %425, %v28
    %v427 = vpop.permute.xlu0 %426
    %429 = vset.pattern.permute.xlu0 1
    %430 = vperm.xlu0 %429, %v29
    %v431 = vpop.permute.xlu0 %430
    %433 = vset.pattern.permute.xlu0 1
    %434 = vperm.xlu0 %433, %v30
    %v435 = vpop.permute.xlu0 %434
    %437 = vset.pattern.permute.xlu0 1
    %438 = vperm.xlu0 %437, %v31
    %v439 = vpop.permute.xlu0 %438
    %441 = vset.pattern.permute.xlu0 1
    %442 = vperm.xlu0 %441, %v32
    %v443 = vpop.permute.xlu0 %442
    %445 = vset.pattern.permute.xlu0 1
    %446 = vperm.xlu0 %445, %v33
    %v447 = vpop.permute.xlu0 %446
    %449 = vset.pattern.permute.xlu0 1
    %450 = vperm.xlu0 %449, %v34
    %v451 = vpop.permute.xlu0 %450
    %453 = vset.pattern.permute.xlu0 1
    %454 = vperm.xlu0 %453, %v35
    %v455 = vpop.permute.xlu0 %454
    %457 = vset.pattern.permute.xlu0 1
    %458 = vperm.xlu0 %457, %v36
    %v459 = vpop.permute.xlu0 %458
    %461 = vset.pattern.permute.xlu0 1
    %462 = vperm.xlu0 %461, %v37
    %v463 = vpop.permute.xlu0 %462
    %465 = vset.pattern.permute.xlu0 1
    %466 = vperm.xlu0 %465, %v38
    %v467 = vpop.permute.xlu0 %466
    %469 = vset.pattern.permute.xlu0 1
    %470 = vperm.xlu0 %469, %v39
    %v471 = vpop.permute.xlu0 %470
    %473 = vset.pattern.permute.xlu0 1
    %474 = vperm.xlu0 %473, %v40
    %v475 = vpop.permute.xlu0 %474
    %477 = vset.pattern.permute.xlu0 1
    %478 = vperm.xlu0 %477, %v41
    %v479 = vpop.permute.xlu0 %478
    %481 = vset.pattern.permute.xlu0 1
    %482 = vperm.xlu0 %481, %v42
    %v483 = vpop.permute.xlu0 %482
    %v485 = vmul.f32 %v408, %v423
    %v486 = vmul.f32 %v412, %v423
    %v487 = vmul.f32 %v408, %v427
    %v488 = vmul.f32 %v412, %v427
    %v489 = vmul.f32 %v408, %v431
    %v490 = vmul.f32 %v412, %v431
    %v491 = vmul.f32 %v408, %v435
    %v492 = vmul.f32 %v412, %v435
    %v493 = vmul.f32 %v408, %v439
    %v494 = vmul.f32 %v412, %v439
    %v495 = vmul.f32 %v408, %v443
    %v496 = vmul.f32 %v412, %v443
    %v497 = vmul.f32 %v408, %v447
    %v498 = vmul.f32 %v412, %v447
    %v499 = vmul.f32 %v408, %v451
    %v500 = vmul.f32 %v412, %v451
    %v501 = vmul.f32 %v408, %v455
    %v502 = vmul.f32 %v412, %v455
    %v503 = vmul.f32 %v408, %v459
    %v504 = vmul.f32 %v412, %v459
    %v505 = vmul.f32 %v408, %v463
    %v506 = vmul.f32 %v412, %v463
    %v507 = vmul.f32 %v408, %v467
    %v508 = vmul.f32 %v412, %v467
    %v509 = vmul.f32 %v408, %v471
    %v510 = vmul.f32 %v412, %v471
    %v511 = vmul.f32 %v408, %v475
    %v512 = vmul.f32 %v412, %v475
    %v513 = vmul.f32 %v408, %v479
    %v514 = vmul.f32 %v412, %v479
    %v515 = vmul.f32 %v408, %v483
    %v516 = vmul.f32 %v412, %v483
    %v517 = vmul.f32 %v416, %v423
    %v518 = vmul.f32 %v420, %v423
    %v519 = vmul.f32 %v416, %v427
    %v520 = vmul.f32 %v420, %v427
    %v521 = vmul.f32 %v416, %v431
    %v522 = vmul.f32 %v420, %v431
    %v523 = vmul.f32 %v416, %v435
    %v524 = vmul.f32 %v420, %v435
    %v525 = vmul.f32 %v416, %v439
    %v526 = vmul.f32 %v420, %v439
    %v527 = vmul.f32 %v416, %v443
    %v528 = vmul.f32 %v420, %v443
    %v529 = vmul.f32 %v416, %v447
    %v530 = vmul.f32 %v420, %v447
    %v531 = vmul.f32 %v416, %v451
    %v532 = vmul.f32 %v420, %v451
    %v533 = vmul.f32 %v416, %v455
    %v534 = vmul.f32 %v420, %v455
    %v535 = vmul.f32 %v416, %v459
    %v536 = vmul.f32 %v420, %v459
    %v537 = vmul.f32 %v416, %v463
    %v538 = vmul.f32 %v420, %v463
    %v539 = vmul.f32 %v416, %v467
    %v540 = vmul.f32 %v420, %v467
    %v541 = vmul.f32 %v416, %v471
    %v542 = vmul.f32 %v420, %v471
    %v543 = vmul.f32 %v416, %v475
    %v544 = vmul.f32 %v420, %v475
    %v545 = vmul.f32 %v416, %v479
    %v546 = vmul.f32 %v420, %v479
    %v547 = vmul.f32 %v416, %v483
    %v548 = vmul.f32 %v420, %v483
    %v549 = vadd.f32 %v321, %v485
    %v550 = vadd.f32 %v322, %v486
    %v551 = vadd.f32 %v323, %v487
    %v552 = vadd.f32 %v324, %v488
    %v553 = vadd.f32 %v325, %v489
    %v554 = vadd.f32 %v326, %v490
    %v555 = vadd.f32 %v327, %v491
    %v556 = vadd.f32 %v328, %v492
    %v557 = vadd.f32 %v329, %v493
    %v558 = vadd.f32 %v330, %v494
    %v559 = vadd.f32 %v331, %v495
    %v560 = vadd.f32 %v332, %v496
    %v561 = vadd.f32 %v333, %v497
    %v562 = vadd.f32 %v334, %v498
    %v563 = vadd.f32 %v335, %v499
    %v564 = vadd.f32 %v336, %v500
    %v565 = vadd.f32 %v337, %v501
    %v566 = vadd.f32 %v338, %v502
    %v567 = vadd.f32 %v339, %v503
    %v568 = vadd.f32 %v340, %v504
    %v569 = vadd.f32 %v341, %v505
    %v570 = vadd.f32 %v342, %v506
    %v571 = vadd.f32 %v343, %v507
    %v572 = vadd.f32 %v344, %v508
    %v573 = vadd.f32 %v345, %v509
    %v574 = vadd.f32 %v346, %v510
    %v575 = vadd.f32 %v347, %v511
    %v576 = vadd.f32 %v348, %v512
    %v577 = vadd.f32 %v349, %v513
    %v578 = vadd.f32 %v350, %v514
    %v579 = vadd.f32 %v351, %v515
    %v580 = vadd.f32 %v352, %v516
    %v581 = vadd.f32 %v353, %v517
    %v582 = vadd.f32 %v354, %v518
    %v583 = vadd.f32 %v355, %v519
    %v584 = vadd.f32 %v356, %v520
    %v585 = vadd.f32 %v357, %v521
    %v586 = vadd.f32 %v358, %v522
    %v587 = vadd.f32 %v359, %v523
    %v588 = vadd.f32 %v360, %v524
    %v589 = vadd.f32 %v361, %v525
    %v590 = vadd.f32 %v362, %v526
    %v591 = vadd.f32 %v363, %v527
    %v592 = vadd.f32 %v364, %v528
    %v593 = vadd.f32 %v365, %v529
    %v594 = vadd.f32 %v366, %v530
    %v595 = vadd.f32 %v367, %v531
    %v596 = vadd.f32 %v368, %v532
    %v597 = vadd.f32 %v369, %v533
    %v598 = vadd.f32 %v370, %v534
    %v599 = vadd.f32 %v371, %v535
    %v600 = vadd.f32 %v372, %v536
    %v601 = vadd.f32 %v373, %v537
    %v602 = vadd.f32 %v374, %v538
    %v603 = vadd.f32 %v375, %v539
    %v604 = vadd.f32 %v376, %v540
    %v605 = vadd.f32 %v377, %v541
    %v606 = vadd.f32 %v378, %v542
    %v607 = vadd.f32 %v379, %v543
    %v608 = vadd.f32 %v380, %v544
    %v609 = vadd.f32 %v381, %v545
    %v610 = vadd.f32 %v382, %v546
    %v611 = vadd.f32 %v383, %v547
    %v612 = vadd.f32 %v384, %v548
    %v613 = vlaneseq
    %v614 = vshrl.u32 %v613, 7
    %v615 = vsub.s32 2, %v614
    %v616 = vrot.slane %v25, %v615
    %v617 = vlaneseq
    %v618 = vshrl.u32 %v617, 7
    %v619 = vsub.s32 6, %v618
    %v620 = vrot.slane %v25, %v619
    %v621 = vlaneseq
    %v622 = vshrl.u32 %v621, 7
    %v623 = vsub.s32 2, %v622
    %v624 = vrot.slane %v26, %v623
    %v625 = vlaneseq
    %v626 = vshrl.u32 %v625, 7
    %v627 = vsub.s32 6, %v626
    %v628 = vrot.slane %v26, %v627
    %v633 = vlaneseq
    %v634 = vshrl.u32 %v633, 7
    %v635 = vsub.s32 2, %v634
    %v636 = vrot.slane %v616, %v635
    %v637 = vlaneseq
    %v638 = vshrl.u32 %v637, 7
    %v639 = vsub.s32 2, %v638
    %v640 = vrot.slane %v620, %v639
    %v641 = vlaneseq
    %v642 = vshrl.u32 %v641, 7
    %v643 = vsub.s32 2, %v642
    %v644 = vrot.slane %v624, %v643
    %v645 = vlaneseq
    %v646 = vshrl.u32 %v645, 7
    %v647 = vsub.s32 2, %v646
    %v648 = vrot.slane %v628, %v647
    %649 = vset.pattern.permute.xlu0 2
    %650 = vperm.xlu0 %649, %v27
    %v651 = vpop.permute.xlu0 %650
    %653 = vset.pattern.permute.xlu0 2
    %654 = vperm.xlu0 %653, %v28
    %v655 = vpop.permute.xlu0 %654
    %657 = vset.pattern.permute.xlu0 2
    %658 = vperm.xlu0 %657, %v29
    %v659 = vpop.permute.xlu0 %658
    %661 = vset.pattern.permute.xlu0 2
    %662 = vperm.xlu0 %661, %v30
    %v663 = vpop.permute.xlu0 %662
    %665 = vset.pattern.permute.xlu0 2
    %666 = vperm.xlu0 %665, %v31
    %v667 = vpop.permute.xlu0 %666
    %669 = vset.pattern.permute.xlu0 2
    %670 = vperm.xlu0 %669, %v32
    %v671 = vpop.permute.xlu0 %670
    %673 = vset.pattern.permute.xlu0 2
    %674 = vperm.xlu0 %673, %v33
    %v675 = vpop.permute.xlu0 %674
    %677 = vset.pattern.permute.xlu0 2
    %678 = vperm.xlu0 %677, %v34
    %v679 = vpop.permute.xlu0 %678
    %681 = vset.pattern.permute.xlu0 2
    %682 = vperm.xlu0 %681, %v35
    %v683 = vpop.permute.xlu0 %682
    %685 = vset.pattern.permute.xlu0 2
    %686 = vperm.xlu0 %685, %v36
    %v687 = vpop.permute.xlu0 %686
    %689 = vset.pattern.permute.xlu0 2
    %690 = vperm.xlu0 %689, %v37
    %v691 = vpop.permute.xlu0 %690
    %693 = vset.pattern.permute.xlu0 2
    %694 = vperm.xlu0 %693, %v38
    %v695 = vpop.permute.xlu0 %694
    %697 = vset.pattern.permute.xlu0 2
    %698 = vperm.xlu0 %697, %v39
    %v699 = vpop.permute.xlu0 %698
    %701 = vset.pattern.permute.xlu0 2
    %702 = vperm.xlu0 %701, %v40
    %v703 = vpop.permute.xlu0 %702
    %705 = vset.pattern.permute.xlu0 2
    %706 = vperm.xlu0 %705, %v41
    %v707 = vpop.permute.xlu0 %706
    %709 = vset.pattern.permute.xlu0 2
    %710 = vperm.xlu0 %709, %v42
    %v711 = vpop.permute.xlu0 %710
    %v713 = vmul.f32 %v636, %v651
    %v714 = vmul.f32 %v640, %v651
    %v715 = vmul.f32 %v636, %v655
    %v716 = vmul.f32 %v640, %v655
    %v717 = vmul.f32 %v636, %v659
    %v718 = vmul.f32 %v640, %v659
    %v719 = vmul.f32 %v636, %v663
    %v720 = vmul.f32 %v640, %v663
    %v721 = vmul.f32 %v636, %v667
    %v722 = vmul.f32 %v640, %v667
    %v723 = vmul.f32 %v636, %v671
    %v724 = vmul.f32 %v640, %v671
    %v725 = vmul.f32 %v636, %v675
    %v726 = vmul.f32 %v640, %v675
    %v727 = vmul.f32 %v636, %v679
    %v728 = vmul.f32 %v640, %v679
    %v729 = vmul.f32 %v636, %v683
    %v730 = vmul.f32 %v640, %v683
    %v731 = vmul.f32 %v636, %v687
    %v732 = vmul.f32 %v640, %v687
    %v733 = vmul.f32 %v636, %v691
    %v734 = vmul.f32 %v640, %v691
    %v735 = vmul.f32 %v636, %v695
    %v736 = vmul.f32 %v640, %v695
    %v737 = vmul.f32 %v636, %v699
    %v738 = vmul.f32 %v640, %v699
    %v739 = vmul.f32 %v636, %v703
    %v740 = vmul.f32 %v640, %v703
    %v741 = vmul.f32 %v636, %v707
    %v742 = vmul.f32 %v640, %v707
    %v743 = vmul.f32 %v636, %v711
    %v744 = vmul.f32 %v640, %v711
    %v745 = vmul.f32 %v644, %v651
    %v746 = vmul.f32 %v648, %v651
    %v747 = vmul.f32 %v644, %v655
    %v748 = vmul.f32 %v648, %v655
    %v749 = vmul.f32 %v644, %v659
    %v750 = vmul.f32 %v648, %v659
    %v751 = vmul.f32 %v644, %v663
    %v752 = vmul.f32 %v648, %v663
    %v753 = vmul.f32 %v644, %v667
    %v754 = vmul.f32 %v648, %v667
    %v755 = vmul.f32 %v644, %v671
    %v756 = vmul.f32 %v648, %v671
    %v757 = vmul.f32 %v644, %v675
    %v758 = vmul.f32 %v648, %v675
    %v759 = vmul.f32 %v644, %v679
    %v760 = vmul.f32 %v648, %v679
    %v761 = vmul.f32 %v644, %v683
    %v762 = vmul.f32 %v648, %v683
    %v763 = vmul.f32 %v644, %v687
    %v764 = vmul.f32 %v648, %v687
    %v765 = vmul.f32 %v644, %v691
    %v766 = vmul.f32 %v648, %v691
    %v767 = vmul.f32 %v644, %v695
    %v768 = vmul.f32 %v648, %v695
    %v769 = vmul.f32 %v644, %v699
    %v770 = vmul.f32 %v648, %v699
    %v771 = vmul.f32 %v644, %v703
    %v772 = vmul.f32 %v648, %v703
    %v773 = vmul.f32 %v644, %v707
    %v774 = vmul.f32 %v648, %v707
    %v775 = vmul.f32 %v644, %v711
    %v776 = vmul.f32 %v648, %v711
    %v777 = vadd.f32 %v549, %v713
    %v778 = vadd.f32 %v550, %v714
    %v779 = vadd.f32 %v551, %v715
    %v780 = vadd.f32 %v552, %v716
    %v781 = vadd.f32 %v553, %v717
    %v782 = vadd.f32 %v554, %v718
    %v783 = vadd.f32 %v555, %v719
    %v784 = vadd.f32 %v556, %v720
    %v785 = vadd.f32 %v557, %v721
    %v786 = vadd.f32 %v558, %v722
    %v787 = vadd.f32 %v559, %v723
    %v788 = vadd.f32 %v560, %v724
    %v789 = vadd.f32 %v561, %v725
    %v790 = vadd.f32 %v562, %v726
    %v791 = vadd.f32 %v563, %v727
    %v792 = vadd.f32 %v564, %v728
    %v793 = vadd.f32 %v565, %v729
    %v794 = vadd.f32 %v566, %v730
    %v795 = vadd.f32 %v567, %v731
    %v796 = vadd.f32 %v568, %v732
    %v797 = vadd.f32 %v569, %v733
    %v798 = vadd.f32 %v570, %v734
    %v799 = vadd.f32 %v571, %v735
    %v800 = vadd.f32 %v572, %v736
    %v801 = vadd.f32 %v573, %v737
    %v802 = vadd.f32 %v574, %v738
    %v803 = vadd.f32 %v575, %v739
    %v804 = vadd.f32 %v576, %v740
    %v805 = vadd.f32 %v577, %v741
    %v806 = vadd.f32 %v578, %v742
    %v807 = vadd.f32 %v579, %v743
    %v808 = vadd.f32 %v580, %v744
    %v809 = vadd.f32 %v581, %v745
    %v810 = vadd.f32 %v582, %v746
    %v811 = vadd.f32 %v583, %v747
    %v812 = vadd.f32 %v584, %v748
    %v813 = vadd.f32 %v585, %v749
    %v814 = vadd.f32 %v586, %v750
    %v815 = vadd.f32 %v587, %v751
    %v816 = vadd.f32 %v588, %v752
    %v817 = vadd.f32 %v589, %v753
    %v818 = vadd.f32 %v590, %v754
    %v819 = vadd.f32 %v591, %v755
    %v820 = vadd.f32 %v592, %v756
    %v821 = vadd.f32 %v593, %v757
    %v822 = vadd.f32 %v594, %v758
    %v823 = vadd.f32 %v595, %v759
    %v824 = vadd.f32 %v596, %v760
    %v825 = vadd.f32 %v597, %v761
    %v826 = vadd.f32 %v598, %v762
    %v827 = vadd.f32 %v599, %v763
    %v828 = vadd.f32 %v600, %v764
    %v829 = vadd.f32 %v601, %v765
    %v830 = vadd.f32 %v602, %v766
    %v831 = vadd.f32 %v603, %v767
    %v832 = vadd.f32 %v604, %v768
    %v833 = vadd.f32 %v605, %v769
    %v834 = vadd.f32 %v606, %v770
    %v835 = vadd.f32 %v607, %v771
    %v836 = vadd.f32 %v608, %v772
    %v837 = vadd.f32 %v609, %v773
    %v838 = vadd.f32 %v610, %v774
    %v839 = vadd.f32 %v611, %v775
    %v840 = vadd.f32 %v612, %v776
    %v841 = vlaneseq
    %v842 = vshrl.u32 %v841, 7
    %v843 = vsub.s32 3, %v842
    %v844 = vrot.slane %v25, %v843
    %v845 = vlaneseq
    %v846 = vshrl.u32 %v845, 7
    %v847 = vsub.s32 7, %v846
    %v848 = vrot.slane %v25, %v847
    %v849 = vlaneseq
    %v850 = vshrl.u32 %v849, 7
    %v851 = vsub.s32 3, %v850
    %v852 = vrot.slane %v26, %v851
    %v853 = vlaneseq
    %v854 = vshrl.u32 %v853, 7
    %v855 = vsub.s32 7, %v854
    %v856 = vrot.slane %v26, %v855
    %v861 = vlaneseq
    %v862 = vshrl.u32 %v861, 7
    %v863 = vsub.s32 3, %v862
    %v864 = vrot.slane %v844, %v863
    %v865 = vlaneseq
    %v866 = vshrl.u32 %v865, 7
    %v867 = vsub.s32 3, %v866
    %v868 = vrot.slane %v848, %v867
    %v869 = vlaneseq
    %v870 = vshrl.u32 %v869, 7
    %v871 = vsub.s32 3, %v870
    %v872 = vrot.slane %v852, %v871
    %v873 = vlaneseq
    %v874 = vshrl.u32 %v873, 7
    %v875 = vsub.s32 3, %v874
    %v876 = vrot.slane %v856, %v875
    %877 = vset.pattern.permute.xlu0 3
    %878 = vperm.xlu0 %877, %v27
    %v879 = vpop.permute.xlu0 %878
    %881 = vset.pattern.permute.xlu0 3
    %882 = vperm.xlu0 %881, %v28
    %v883 = vpop.permute.xlu0 %882
    %885 = vset.pattern.permute.xlu0 3
    %886 = vperm.xlu0 %885, %v29
    %v887 = vpop.permute.xlu0 %886
    %889 = vset.pattern.permute.xlu0 3
    %890 = vperm.xlu0 %889, %v30
    %v891 = vpop.permute.xlu0 %890
    %893 = vset.pattern.permute.xlu0 3
    %894 = vperm.xlu0 %893, %v31
    %v895 = vpop.permute.xlu0 %894
    %897 = vset.pattern.permute.xlu0 3
    %898 = vperm.xlu0 %897, %v32
    %v899 = vpop.permute.xlu0 %898
    %901 = vset.pattern.permute.xlu0 3
    %902 = vperm.xlu0 %901, %v33
    %v903 = vpop.permute.xlu0 %902
    %905 = vset.pattern.permute.xlu0 3
    %906 = vperm.xlu0 %905, %v34
    %v907 = vpop.permute.xlu0 %906
    %909 = vset.pattern.permute.xlu0 3
    %910 = vperm.xlu0 %909, %v35
    %v911 = vpop.permute.xlu0 %910
    %913 = vset.pattern.permute.xlu0 3
    %914 = vperm.xlu0 %913, %v36
    %v915 = vpop.permute.xlu0 %914
    %917 = vset.pattern.permute.xlu0 3
    %918 = vperm.xlu0 %917, %v37
    %v919 = vpop.permute.xlu0 %918
    %921 = vset.pattern.permute.xlu0 3
    %922 = vperm.xlu0 %921, %v38
    %v923 = vpop.permute.xlu0 %922
    %925 = vset.pattern.permute.xlu0 3
    %926 = vperm.xlu0 %925, %v39
    %v927 = vpop.permute.xlu0 %926
    %929 = vset.pattern.permute.xlu0 3
    %930 = vperm.xlu0 %929, %v40
    %v931 = vpop.permute.xlu0 %930
    %933 = vset.pattern.permute.xlu0 3
    %934 = vperm.xlu0 %933, %v41
    %v935 = vpop.permute.xlu0 %934
    %937 = vset.pattern.permute.xlu0 3
    %938 = vperm.xlu0 %937, %v42
    %v939 = vpop.permute.xlu0 %938
    %v941 = vmul.f32 %v864, %v879
    %v942 = vmul.f32 %v868, %v879
    %v943 = vmul.f32 %v864, %v883
    %v944 = vmul.f32 %v868, %v883
    %v945 = vmul.f32 %v864, %v887
    %v946 = vmul.f32 %v868, %v887
    %v947 = vmul.f32 %v864, %v891
    %v948 = vmul.f32 %v868, %v891
    %v949 = vmul.f32 %v864, %v895
    %v950 = vmul.f32 %v868, %v895
    %v951 = vmul.f32 %v864, %v899
    %v952 = vmul.f32 %v868, %v899
    %v953 = vmul.f32 %v864, %v903
    %v954 = vmul.f32 %v868, %v903
    %v955 = vmul.f32 %v864, %v907
    %v956 = vmul.f32 %v868, %v907
    %v957 = vmul.f32 %v864, %v911
    %v958 = vmul.f32 %v868, %v911
    %v959 = vmul.f32 %v864, %v915
    %v960 = vmul.f32 %v868, %v915
    %v961 = vmul.f32 %v864, %v919
    %v962 = vmul.f32 %v868, %v919
    %v963 = vmul.f32 %v864, %v923
    %v964 = vmul.f32 %v868, %v923
    %v965 = vmul.f32 %v864, %v927
    %v966 = vmul.f32 %v868, %v927
    %v967 = vmul.f32 %v864, %v931
    %v968 = vmul.f32 %v868, %v931
    %v969 = vmul.f32 %v864, %v935
    %v970 = vmul.f32 %v868, %v935
    %v971 = vmul.f32 %v864, %v939
    %v972 = vmul.f32 %v868, %v939
    %v973 = vmul.f32 %v872, %v879
    %v974 = vmul.f32 %v876, %v879
    %v975 = vmul.f32 %v872, %v883
    %v976 = vmul.f32 %v876, %v883
    %v977 = vmul.f32 %v872, %v887
    %v978 = vmul.f32 %v876, %v887
    %v979 = vmul.f32 %v872, %v891
    %v980 = vmul.f32 %v876, %v891
    %v981 = vmul.f32 %v872, %v895
    %v982 = vmul.f32 %v876, %v895
    %v983 = vmul.f32 %v872, %v899
    %v984 = vmul.f32 %v876, %v899
    %v985 = vmul.f32 %v872, %v903
    %v986 = vmul.f32 %v876, %v903
    %v987 = vmul.f32 %v872, %v907
    %v988 = vmul.f32 %v876, %v907
    %v989 = vmul.f32 %v872, %v911
    %v990 = vmul.f32 %v876, %v911
    %v991 = vmul.f32 %v872, %v915
    %v992 = vmul.f32 %v876, %v915
    %v993 = vmul.f32 %v872, %v919
    %v994 = vmul.f32 %v876, %v919
    %v995 = vmul.f32 %v872, %v923
    %v996 = vmul.f32 %v876, %v923
    %v997 = vmul.f32 %v872, %v927
    %v998 = vmul.f32 %v876, %v927
    %v999 = vmul.f32 %v872, %v931
    %v1000 = vmul.f32 %v876, %v931
    %v1001 = vmul.f32 %v872, %v935
    %v1002 = vmul.f32 %v876, %v935
    %v1003 = vmul.f32 %v872, %v939
    %v1004 = vmul.f32 %v876, %v939
    %v1005 = vadd.f32 %v777, %v941
    %v1006 = vadd.f32 %v778, %v942
    %v1007 = vadd.f32 %v779, %v943
    %v1008 = vadd.f32 %v780, %v944
    %v1009 = vadd.f32 %v781, %v945
    %v1010 = vadd.f32 %v782, %v946
    %v1011 = vadd.f32 %v783, %v947
    %v1012 = vadd.f32 %v784, %v948
    %v1013 = vadd.f32 %v785, %v949
    %v1014 = vadd.f32 %v786, %v950
    %v1015 = vadd.f32 %v787, %v951
    %v1016 = vadd.f32 %v788, %v952
    %v1017 = vadd.f32 %v789, %v953
    %v1018 = vadd.f32 %v790, %v954
    %v1019 = vadd.f32 %v791, %v955
    %v1020 = vadd.f32 %v792, %v956
    %v1021 = vadd.f32 %v793, %v957
    %v1022 = vadd.f32 %v794, %v958
    %v1023 = vadd.f32 %v795, %v959
    %v1024 = vadd.f32 %v796, %v960
    %v1025 = vadd.f32 %v797, %v961
    %v1026 = vadd.f32 %v798, %v962
    %v1027 = vadd.f32 %v799, %v963
    %v1028 = vadd.f32 %v800, %v964
    %v1029 = vadd.f32 %v801, %v965
    %v1030 = vadd.f32 %v802, %v966
    %v1031 = vadd.f32 %v803, %v967
    %v1032 = vadd.f32 %v804, %v968
    %v1033 = vadd.f32 %v805, %v969
    %v1034 = vadd.f32 %v806, %v970
    %v1035 = vadd.f32 %v807, %v971
    %v1036 = vadd.f32 %v808, %v972
    %v1037 = vadd.f32 %v809, %v973
    %v1038 = vadd.f32 %v810, %v974
    %v1039 = vadd.f32 %v811, %v975
    %v1040 = vadd.f32 %v812, %v976
    %v1041 = vadd.f32 %v813, %v977
    %v1042 = vadd.f32 %v814, %v978
    %v1043 = vadd.f32 %v815, %v979
    %v1044 = vadd.f32 %v816, %v980
    %v1045 = vadd.f32 %v817, %v981
    %v1046 = vadd.f32 %v818, %v982
    %v1047 = vadd.f32 %v819, %v983
    %v1048 = vadd.f32 %v820, %v984
    %v1049 = vadd.f32 %v821, %v985
    %v1050 = vadd.f32 %v822, %v986
    %v1051 = vadd.f32 %v823, %v987
    %v1052 = vadd.f32 %v824, %v988
    %v1053 = vadd.f32 %v825, %v989
    %v1054 = vadd.f32 %v826, %v990
    %v1055 = vadd.f32 %v827, %v991
    %v1056 = vadd.f32 %v828, %v992
    %v1057 = vadd.f32 %v829, %v993
    %v1058 = vadd.f32 %v830, %v994
    %v1059 = vadd.f32 %v831, %v995
    %v1060 = vadd.f32 %v832, %v996
    %v1061 = vadd.f32 %v833, %v997
    %v1062 = vadd.f32 %v834, %v998
    %v1063 = vadd.f32 %v835, %v999
    %v1064 = vadd.f32 %v836, %v1000
    %v1065 = vadd.f32 %v837, %v1001
    %v1066 = vadd.f32 %v838, %v1002
    %v1067 = vadd.f32 %v839, %v1003
    %v1068 = vadd.f32 %v840, %v1004
    %v1069 = vmax.f32 %v1005, 0.0
    %v1070 = vmax.f32 %v1006, 0.0
    %v1071 = vmax.f32 %v1007, 0.0
    %v1072 = vmax.f32 %v1008, 0.0
    %v1073 = vmax.f32 %v1009, 0.0
    %v1074 = vmax.f32 %v1010, 0.0
    %v1075 = vmax.f32 %v1011, 0.0
    %v1076 = vmax.f32 %v1012, 0.0
    %v1077 = vmax.f32 %v1013, 0.0
    %v1078 = vmax.f32 %v1014, 0.0
    %v1079 = vmax.f32 %v1015, 0.0
    %v1080 = vmax.f32 %v1016, 0.0
    %v1081 = vmax.f32 %v1017, 0.0
    %v1082 = vmax.f32 %v1018, 0.0
    %v1083 = vmax.f32 %v1019, 0.0
    %v1084 = vmax.f32 %v1020, 0.0
    %v1085 = vmax.f32 %v1021, 0.0
    %v1086 = vmax.f32 %v1022, 0.0
    %v1087 = vmax.f32 %v1023, 0.0
    %v1088 = vmax.f32 %v1024, 0.0
    %v1089 = vmax.f32 %v1025, 0.0
    %v1090 = vmax.f32 %v1026, 0.0
    %v1091 = vmax.f32 %v1027, 0.0
    %v1092 = vmax.f32 %v1028, 0.0
    %v1093 = vmax.f32 %v1029, 0.0
    %v1094 = vmax.f32 %v1030, 0.0
    %v1095 = vmax.f32 %v1031, 0.0
    %v1096 = vmax.f32 %v1032, 0.0
    %v1097 = vmax.f32 %v1033, 0.0
    %v1098 = vmax.f32 %v1034, 0.0
    %v1099 = vmax.f32 %v1035, 0.0
    %v1100 = vmax.f32 %v1036, 0.0
    %v1101 = vmax.f32 %v1037, 0.0
    %v1102 = vmax.f32 %v1038, 0.0
    %v1103 = vmax.f32 %v1039, 0.0
    %v1104 = vmax.f32 %v1040, 0.0
    %v1105 = vmax.f32 %v1041, 0.0
    %v1106 = vmax.f32 %v1042, 0.0
    %v1107 = vmax.f32 %v1043, 0.0
    %v1108 = vmax.f32 %v1044, 0.0
    %v1109 = vmax.f32 %v1045, 0.0
    %v1110 = vmax.f32 %v1046, 0.0
    %v1111 = vmax.f32 %v1047, 0.0
    %v1112 = vmax.f32 %v1048, 0.0
    %v1113 = vmax.f32 %v1049, 0.0
    %v1114 = vmax.f32 %v1050, 0.0
    %v1115 = vmax.f32 %v1051, 0.0
    %v1116 = vmax.f32 %v1052, 0.0
    %v1117 = vmax.f32 %v1053, 0.0
    %v1118 = vmax.f32 %v1054, 0.0
    %v1119 = vmax.f32 %v1055, 0.0
    %v1120 = vmax.f32 %v1056, 0.0
    %v1121 = vmax.f32 %v1057, 0.0
    %v1122 = vmax.f32 %v1058, 0.0
    %v1123 = vmax.f32 %v1059, 0.0
    %v1124 = vmax.f32 %v1060, 0.0
    %v1125 = vmax.f32 %v1061, 0.0
    %v1126 = vmax.f32 %v1062, 0.0
    %v1127 = vmax.f32 %v1063, 0.0
    %v1128 = vmax.f32 %v1064, 0.0
    %v1129 = vmax.f32 %v1065, 0.0
    %v1130 = vmax.f32 %v1066, 0.0
    %v1131 = vmax.f32 %v1067, 0.0
    %v1132 = vmax.f32 %v1068, 0.0
    %v1133 = vpack.c.bf16 %v1071, %v1069
    %v1134 = vpack.c.bf16 %v1072, %v1070
    %v1135 = vpack.c.bf16 %v1075, %v1073
    %v1136 = vpack.c.bf16 %v1076, %v1074
    %v1137 = vpack.c.bf16 %v1079, %v1077
    %v1138 = vpack.c.bf16 %v1080, %v1078
    %v1139 = vpack.c.bf16 %v1083, %v1081
    %v1140 = vpack.c.bf16 %v1084, %v1082
    %v1141 = vpack.c.bf16 %v1087, %v1085
    %v1142 = vpack.c.bf16 %v1088, %v1086
    %v1143 = vpack.c.bf16 %v1091, %v1089
    %v1144 = vpack.c.bf16 %v1092, %v1090
    %v1145 = vpack.c.bf16 %v1095, %v1093
    %v1146 = vpack.c.bf16 %v1096, %v1094
    %v1147 = vpack.c.bf16 %v1099, %v1097
    %v1148 = vpack.c.bf16 %v1100, %v1098
    %v1149 = vpack.c.bf16 %v1103, %v1101
    %v1150 = vpack.c.bf16 %v1104, %v1102
    %v1151 = vpack.c.bf16 %v1107, %v1105
    %v1152 = vpack.c.bf16 %v1108, %v1106
    %v1153 = vpack.c.bf16 %v1111, %v1109
    %v1154 = vpack.c.bf16 %v1112, %v1110
    %v1155 = vpack.c.bf16 %v1115, %v1113
    %v1156 = vpack.c.bf16 %v1116, %v1114
    %v1157 = vpack.c.bf16 %v1119, %v1117
    %v1158 = vpack.c.bf16 %v1120, %v1118
    %v1159 = vpack.c.bf16 %v1123, %v1121
    %v1160 = vpack.c.bf16 %v1124, %v1122
    %v1161 = vpack.c.bf16 %v1127, %v1125
    %v1162 = vpack.c.bf16 %v1128, %v1126
    %v1163 = vpack.c.bf16 %v1131, %v1129
    %v1164 = vpack.c.bf16 %v1132, %v1130
    %v1165 = vld [vmem:[%s3] sm:$0xff]
    %v1167 = vunpack.c.l.b16 %v1165
    %v1168 = vunpack.c.h.b16 %v1165
    %v1169 = vpack.c.b16 %v1167, %v1167
    %v1170 = vpack.c.b16 %v1168, %v1168
    %1173 = vmatprep.subr.bf16.mxu0 %v1134
    %1174 = vmatpush1.bf16.xpose.msra.mxu0 %v1133
    %1175 = vmatprep.subr.bf16.mxu0 %v1136
    %1176 = vmatpush1.bf16.xpose.msra.mxu0 %v1135
    %1177 = vmatprep.subr.bf16.mxu0 %v1138
    %1178 = vmatpush1.bf16.xpose.msra.mxu0 %v1137
    %1179 = vmatprep.subr.bf16.mxu0 %v1140
    %1180 = vmatpush1.bf16.xpose.msra.mxu0 %v1139
    %1181 = vmatprep.subr.bf16.mxu0 %v1142
    %1182 = vmatpush1.bf16.xpose.msra.mxu0 %v1141
    %1183 = vmatprep.subr.bf16.mxu0 %v1144
    %1184 = vmatpush1.bf16.xpose.msra.mxu0 %v1143
    %1185 = vmatprep.subr.bf16.mxu0 %v1146
    %1186 = vmatpush1.bf16.xpose.msra.mxu0 %v1145
    %1187 = vmatprep.subr.bf16.mxu0 %v1148
    %1188 = vmatpush1.bf16.xpose.msra.mxu0 %v1147
    %1189 = vmatprep.subr.bf16.mxu0 0
    %1190 = vmatpush1.bf16.xpose.msra.mxu0 0
    %1191 = vmatprep.subr.bf16.mxu0 0
    %1192 = vmatpush1.bf16.xpose.msra.mxu0 0
    %1193 = vmatprep.subr.bf16.mxu0 0
    %1194 = vmatpush1.bf16.xpose.msra.mxu0 0
    %1195 = vmatprep.subr.bf16.mxu0 0
    %1196 = vmatpush1.bf16.xpose.msra.mxu0 0
    %1197 = vmatprep.subr.bf16.mxu0 0
    %1198 = vmatpush1.bf16.xpose.msra.mxu0 0
    %1199 = vmatprep.subr.bf16.mxu0 0
    %1200 = vmatpush1.bf16.xpose.msra.mxu0 0
    %1201 = vmatprep.subr.bf16.mxu0 0
    %1202 = vmatpush1.bf16.xpose.msra.mxu0 0
    %1203 = vmatprep.subr.bf16.mxu0 0
    %1204 = vmatpush1.bf16.xpose.msra.mxu0 0
    %1205 = vmatprep.mubr.bf16.mxu0 %v1170
    %1206 = vmatmul.mubr.bf16.gmra.mrb[0].mxu0 %v1169
    %v1207 = vpop.f32.mrb[0].mxu0
    %v1208 = vadd.f32 0.0, %v1207
    %v1209 = vpop.f32.mrb[0].mxu0
    %v1210 = vpop.f32.mrb[0].mxu0
    %v1211 = vpop.f32.mrb[0].mxu0
    %1212 = vdwg.mxu0
    %1213 = vmatprep.subr.bf16.mxu0 %v1150
    %1214 = vmatpush1.bf16.xpose.msra.mxu0 %v1149
    %1215 = vmatprep.subr.bf16.mxu0 %v1152
    %1216 = vmatpush1.bf16.xpose.msra.mxu0 %v1151
    %1217 = vmatprep.subr.bf16.mxu0 %v1154
    %1218 = vmatpush1.bf16.xpose.msra.mxu0 %v1153
    %1219 = vmatprep.subr.bf16.mxu0 %v1156
    %1220 = vmatpush1.bf16.xpose.msra.mxu0 %v1155
    %1221 = vmatprep.subr.bf16.mxu0 %v1158
    %1222 = vmatpush1.bf16.xpose.msra.mxu0 %v1157
    %1223 = vmatprep.subr.bf16.mxu0 %v1160
    %1224 = vmatpush1.bf16.xpose.msra.mxu0 %v1159
    %1225 = vmatprep.subr.bf16.mxu0 %v1162
    %1226 = vmatpush1.bf16.xpose.msra.mxu0 %v1161
    %1227 = vmatprep.subr.bf16.mxu0 %v1164
    %1228 = vmatpush1.bf16.xpose.msra.mxu0 %v1163
    %1229 = vmatprep.subr.bf16.mxu0 0
    %1230 = vmatpush1.bf16.xpose.msra.mxu0 0
    %1231 = vmatprep.subr.bf16.mxu0 0
    %1232 = vmatpush1.bf16.xpose.msra.mxu0 0
    %1233 = vmatprep.subr.bf16.mxu0 0
    %1234 = vmatpush1.bf16.xpose.msra.mxu0 0
    %1235 = vmatprep.subr.bf16.mxu0 0
    %1236 = vmatpush1.bf16.xpose.msra.mxu0 0
    %1237 = vmatprep.subr.bf16.mxu0 0
    %1238 = vmatpush1.bf16.xpose.msra.mxu0 0
    %1239 = vmatprep.subr.bf16.mxu0 0
    %1240 = vmatpush1.bf16.xpose.msra.mxu0 0
    %1241 = vmatprep.subr.bf16.mxu0 0
    %1242 = vmatpush1.bf16.xpose.msra.mxu0 0
    %1243 = vmatprep.subr.bf16.mxu0 0
    %1244 = vmatpush1.bf16.xpose.msra.mxu0 0
    %1245 = vmatprep.mubr.bf16.mxu0 %v1170
    %1246 = vmatmul.mubr.bf16.gmra.mrb[0].mxu0 %v1169
    %v1247 = vpop.f32.mrb[0].mxu0
    %v1248 = vadd.f32 0.0, %v1247
    %v1249 = vpop.f32.mrb[0].mxu0
    %v1250 = vpop.f32.mrb[0].mxu0
    %v1251 = vpop.f32.mrb[0].mxu0
    %1252 = vdwg.mxu0
    %v1253 = vpack.c.bf16 %v1208, %v1208
    %v1254 = vpack.c.bf16 %v1248, %v1248
    %1255 = vmatprep.subr.bf16.mxu0 0
    %1256 = vmatpush1.bf16.xpose.msra.mxu0 %v1253
    %1257 = vmatprep.subr.bf16.mxu0 0
    %1258 = vmatpush1.bf16.xpose.msra.mxu0 0
    %1259 = vmatprep.subr.bf16.mxu0 0
    %1260 = vmatpush1.bf16.xpose.msra.mxu0 0
    %1261 = vmatprep.subr.bf16.mxu0 0
    %1262 = vmatpush1.bf16.xpose.msra.mxu0 0
    %1263 = vmatprep.subr.bf16.mxu0 0
    %1264 = vmatpush1.bf16.xpose.msra.mxu0 0
    %1265 = vmatprep.subr.bf16.mxu0 0
    %1266 = vmatpush1.bf16.xpose.msra.mxu0 0
    %1267 = vmatprep.subr.bf16.mxu0 0
    %1268 = vmatpush1.bf16.xpose.msra.mxu0 0
    %1269 = vmatprep.subr.bf16.mxu0 0
    %1270 = vmatpush1.bf16.xpose.msra.mxu0 0
    %1271 = vmatprep.subr.bf16.mxu0 0
    %1272 = vmatpush1.bf16.xpose.msra.mxu0 0
    %1273 = vmatprep.subr.bf16.mxu0 0
    %1274 = vmatpush1.bf16.xpose.msra.mxu0 0
    %1275 = vmatprep.subr.bf16.mxu0 0
    %1276 = vmatpush1.bf16.xpose.msra.mxu0 0
    %1277 = vmatprep.subr.bf16.mxu0 0
    %1278 = vmatpush1.bf16.xpose.msra.mxu0 0
    %1279 = vmatprep.subr.bf16.mxu0 0
    %1280 = vmatpush1.bf16.xpose.msra.mxu0 0
    %1281 = vmatprep.subr.bf16.mxu0 0
    %1282 = vmatpush1.bf16.xpose.msra.mxu0 0
    %1283 = vmatprep.subr.bf16.mxu0 0
    %1284 = vmatpush1.bf16.xpose.msra.mxu0 0
    %1285 = vmatprep.subr.bf16.mxu0 0
    %1286 = vmatpush1.bf16.xpose.msra.mxu0 0
    %1287 = vmatprep.mubr.bf16.mxu0 0
    %1288 = vmatmul.mubr.bf16.gmra.mrb[0].mxu0 %v1253
    %v1289 = vpop.f32.mrb[0].mxu0
    %v1290 = vadd.f32 0.0, %v1289
    %v1291 = vpop.f32.mrb[0].mxu0
    %v1292 = vpop.f32.mrb[0].mxu0
    %v1293 = vpop.f32.mrb[0].mxu0
    %1294 = vdwg.mxu0
    %1295 = vmatprep.subr.bf16.mxu0 0
    %1296 = vmatpush1.bf16.xpose.msra.mxu0 %v1254
    %1297 = vmatprep.subr.bf16.mxu0 0
    %1298 = vmatpush1.bf16.xpose.msra.mxu0 0
    %1299 = vmatprep.subr.bf16.mxu0 0
    %1300 = vmatpush1.bf16.xpose.msra.mxu0 0
    %1301 = vmatprep.subr.bf16.mxu0 0
    %1302 = vmatpush1.bf16.xpose.msra.mxu0 0
    %1303 = vmatprep.subr.bf16.mxu0 0
    %1304 = vmatpush1.bf16.xpose.msra.mxu0 0
    %1305 = vmatprep.subr.bf16.mxu0 0
    %1306 = vmatpush1.bf16.xpose.msra.mxu0 0
    %1307 = vmatprep.subr.bf16.mxu0 0
    %1308 = vmatpush1.bf16.xpose.msra.mxu0 0
    %1309 = vmatprep.subr.bf16.mxu0 0
    %1310 = vmatpush1.bf16.xpose.msra.mxu0 0
    %1311 = vmatprep.subr.bf16.mxu0 0
    %1312 = vmatpush1.bf16.xpose.msra.mxu0 0
    %1313 = vmatprep.subr.bf16.mxu0 0
    %1314 = vmatpush1.bf16.xpose.msra.mxu0 0
    %1315 = vmatprep.subr.bf16.mxu0 0
    %1316 = vmatpush1.bf16.xpose.msra.mxu0 0
    %1317 = vmatprep.subr.bf16.mxu0 0
    %1318 = vmatpush1.bf16.xpose.msra.mxu0 0
    %1319 = vmatprep.subr.bf16.mxu0 0
    %1320 = vmatpush1.bf16.xpose.msra.mxu0 0
    %1321 = vmatprep.subr.bf16.mxu0 0
    %1322 = vmatpush1.bf16.xpose.msra.mxu0 0
    %1323 = vmatprep.subr.bf16.mxu0 0
    %1324 = vmatpush1.bf16.xpose.msra.mxu0 0
    %1325 = vmatprep.subr.bf16.mxu0 0
    %1326 = vmatpush1.bf16.xpose.msra.mxu0 0
    %1327 = vmatprep.mubr.bf16.mxu0 0
    %1328 = vmatmul.mubr.bf16.gmra.mrb[0].mxu0 %v1254
    %v1329 = vpop.f32.mrb[0].mxu0
    %v1330 = vadd.f32 0.0, %v1329
    %v1331 = vpop.f32.mrb[0].mxu0
    %v1332 = vpop.f32.mrb[0].mxu0
    %v1333 = vpop.f32.mrb[0].mxu0
    %1334 = vdwg.mxu0
    %v1335 = vmul.f32 %v1290, 0.17677669
    %v1336 = vmul.f32 %v1330, 0.17677669
    %v1337 = vlaneseq
    %v1338 = vand.u32 %v1337, 127
    %vm1339 = vcmp.lt.s32.totalorder %v1338, 6
    %v1340 = vsel %vm1339, 1, 0
    %vm1341 = vcmp.eq.s32.totalorder %v1340, 1
    %v1342 = vsel %vm1341, %v1335, -1e+30
    %v1343 = vsel %vm1341, %v1336, -1e+30
    %vm1344 = vcmask 64512
    %v1345 = vsel %vm1344, %v1342, -inf
    %1346 = vmax.xlane.f32.xlu0 %v1345
    %v1347 = vpop.xlane.xlu0 %1346
    %v1348 = vsel %vm1344, %v1343, -inf
    %1349 = vmax.xlane.f32.xlu0 %v1348
    %v1350 = vpop.xlane.xlu0 %1349
    %v1351 = vsub.f32 %v1342, %v1347
    %v1352 = vsub.f32 %v1343, %v1350
    %v1353 = vmul.f32 %v1351, 1.442695
    %v1354 = vpow.pop %v1353
    %v1355 = vmul.f32 %v1352, 1.442695
    %v1356 = vpow.pop %v1355
    %v1357 = vsel %vm1344, %v1354, 0.0
    %1358 = vadd.xlane.f32.xlu0 %v1357
    %v1359 = vpop.xlane.xlu0 %1358
    %v1360 = vsel %vm1344, %v1356, 0.0
    %1361 = vadd.xlane.f32.xlu0 %v1360
    %v1362 = vpop.xlane.xlu0 %1361
    %v1363 = vrcp.pop %v1359
    %v1364 = vrcp.pop %v1362
    %v1365 = vmul.f32 %v1359, %v1363
    %v1366 = vmul.f32 %v1362, %v1364
    %v1367 = vsub.f32 2.0, %v1365
    %v1368 = vsub.f32 2.0, %v1366
    %v1369 = vmul.f32 %v1363, %v1367
    %v1370 = vmul.f32 %v1364, %v1368
    %v1371 = vmul.f32 %v1354, %v1369
    %v1372 = vmul.f32 %v1356, %v1370
    %v1373 = vpack.c.bf16 %v1371, %v1371
    %v1374 = vpack.c.bf16 %v1372, %v1372
    %v1376 = vsel %vm1344, %v1373, 0
    %vm1378 = vcmask 1043456
    %v1380 = vsel %vm1378, %v1253, 0
    %1382 = vmatprep.subr.bf16.mxu0 0
    %1383 = vmatpush1.bf16.msra.mxu0 %v1380
    %1384 = vmatprep.subr.bf16.mxu0 0
    %1385 = vmatpush1.bf16.msra.mxu0 0
    %1386 = vmatprep.subr.bf16.mxu0 0
    %1387 = vmatpush1.bf16.msra.mxu0 0
    %1388 = vmatprep.subr.bf16.mxu0 0
    %1389 = vmatpush1.bf16.msra.mxu0 0
    %1390 = vmatprep.subr.bf16.mxu0 0
    %1391 = vmatpush1.bf16.msra.mxu0 0
    %1392 = vmatprep.subr.bf16.mxu0 0
    %1393 = vmatpush1.bf16.msra.mxu0 0
    %1394 = vmatprep.subr.bf16.mxu0 0
    %1395 = vmatpush1.bf16.msra.mxu0 0
    %1396 = vmatprep.subr.bf16.mxu0 0
    %1397 = vmatpush1.bf16.msra.mxu0 0
    %1398 = vmatprep.subr.bf16.mxu0 0
    %1399 = vmatpush1.bf16.msra.mxu0 0
    %1400 = vmatprep.subr.bf16.mxu0 0
    %1401 = vmatpush1.bf16.msra.mxu0 0
    %1402 = vmatprep.subr.bf16.mxu0 0
    %1403 = vmatpush1.bf16.msra.mxu0 0
    %1404 = vmatprep.subr.bf16.mxu0 0
    %1405 = vmatpush1.bf16.msra.mxu0 0
    %1406 = vmatprep.subr.bf16.mxu0 0
    %1407 = vmatpush1.bf16.msra.mxu0 0
    %1408 = vmatprep.subr.bf16.mxu0 0
    %1409 = vmatpush1.bf16.msra.mxu0 0
    %1410 = vmatprep.subr.bf16.mxu0 0
    %1411 = vmatpush1.bf16.msra.mxu0 0
    %1412 = vmatprep.subr.bf16.mxu0 0
    %1413 = vmatpush1.bf16.msra.mxu0 0
    %1414 = vmatprep.mubr.bf16.mxu0 0
    %1415 = vmatmul.mubr.bf16.gmra.mrb[0].mxu0 %v1376
    %v1416 = vpop.f32.mrb[0].mxu0
    %v1417 = vadd.f32 0.0, %v1416
    %v1418 = vpop.f32.mrb[0].mxu0
    %v1419 = vpop.f32.mrb[0].mxu0
    %v1420 = vpop.f32.mrb[0].mxu0
    %1421 = vdwg.mxu0
    %v1423 = vsel %vm1344, %v1374, 0
    %v1426 = vsel %vm1378, %v1254, 0
    %1428 = vmatprep.subr.bf16.mxu0 0
    %1429 = vmatpush1.bf16.msra.mxu0 %v1426
    %1430 = vmatprep.subr.bf16.mxu0 0
    %1431 = vmatpush1.bf16.msra.mxu0 0
    %1432 = vmatprep.subr.bf16.mxu0 0
    %1433 = vmatpush1.bf16.msra.mxu0 0
    %1434 = vmatprep.subr.bf16.mxu0 0
    %1435 = vmatpush1.bf16.msra.mxu0 0
    %1436 = vmatprep.subr.bf16.mxu0 0
    %1437 = vmatpush1.bf16.msra.mxu0 0
    %1438 = vmatprep.subr.bf16.mxu0 0
    %1439 = vmatpush1.bf16.msra.mxu0 0
    %1440 = vmatprep.subr.bf16.mxu0 0
    %1441 = vmatpush1.bf16.msra.mxu0 0
    %1442 = vmatprep.subr.bf16.mxu0 0
    %1443 = vmatpush1.bf16.msra.mxu0 0
    %1444 = vmatprep.subr.bf16.mxu0 0
    %1445 = vmatpush1.bf16.msra.mxu0 0
    %1446 = vmatprep.subr.bf16.mxu0 0
    %1447 = vmatpush1.bf16.msra.mxu0 0
    %1448 = vmatprep.subr.bf16.mxu0 0
    %1449 = vmatpush1.bf16.msra.mxu0 0
    %1450 = vmatprep.subr.bf16.mxu0 0
    %1451 = vmatpush1.bf16.msra.mxu0 0
    %1452 = vmatprep.subr.bf16.mxu0 0
    %1453 = vmatpush1.bf16.msra.mxu0 0
    %1454 = vmatprep.subr.bf16.mxu0 0
    %1455 = vmatpush1.bf16.msra.mxu0 0
    %1456 = vmatprep.subr.bf16.mxu0 0
    %1457 = vmatpush1.bf16.msra.mxu0 0
    %1458 = vmatprep.subr.bf16.mxu0 0
    %1459 = vmatpush1.bf16.msra.mxu0 0
    %1460 = vmatprep.mubr.bf16.mxu0 0
    %1461 = vmatmul.mubr.bf16.gmra.mrb[0].mxu0 %v1423
    %v1462 = vpop.f32.mrb[0].mxu0
    %v1463 = vadd.f32 0.0, %v1462
    %v1464 = vpop.f32.mrb[0].mxu0
    %v1465 = vpop.f32.mrb[0].mxu0
    %v1466 = vpop.f32.mrb[0].mxu0
    %1467 = vdwg.mxu0
    %v1468 = vpack.c.bf16 %v1463, %v1417
    %v1469 = vld [vmem:[%s4] sm:$0xf]
    %v1470 = vld [vmem:[%s4 + $0x4] sm:$0xf]
    %v1471 = vld [vmem:[%s4 + $0x8] sm:$0xf]
    %v1472 = vld [vmem:[%s4 + $0xc] sm:$0xf]
    %v1473 = vld [vmem:[%s4 + $0x10] sm:$0xf]
    %v1474 = vld [vmem:[%s4 + $0x14] sm:$0xf]
    %v1475 = vld [vmem:[%s4 + $0x18] sm:$0xf]
    %v1476 = vld [vmem:[%s4 + $0x1c] sm:$0xf]
    %v1477 = vld [vmem:[%s4 + $0x20] sm:$0xf]
    %v1478 = vld [vmem:[%s4 + $0x24] sm:$0xf]
    %v1479 = vld [vmem:[%s4 + $0x28] sm:$0xf]
    %v1480 = vld [vmem:[%s4 + $0x2c] sm:$0xf]
    %v1481 = vld [vmem:[%s4 + $0x30] sm:$0xf]
    %v1482 = vld [vmem:[%s4 + $0x34] sm:$0xf]
    %v1483 = vld [vmem:[%s4 + $0x38] sm:$0xf]
    %v1484 = vld [vmem:[%s4 + $0x3c] sm:$0xf]
    %v1485 = vld [vmem:[%s5] sm:$0x1]
    %v1487 = vlaneseq
    %v1488 = vshrl.u32 %v1487, 7
    %v1489 = vsub.s32 0, %v1488
    %v1490 = vrot.slane %v1485, %v1489
    %v1508 = vunpack.c.l.b16 %v1469
    %v1509 = vunpack.c.l.b16 %v1470
    %v1510 = vunpack.c.l.b16 %v1471
    %v1511 = vunpack.c.l.b16 %v1472
    %v1512 = vunpack.c.l.b16 %v1473
    %v1513 = vunpack.c.l.b16 %v1474
    %v1514 = vunpack.c.l.b16 %v1475
    %v1515 = vunpack.c.l.b16 %v1476
    %v1516 = vunpack.c.l.b16 %v1477
    %v1517 = vunpack.c.l.b16 %v1478
    %v1518 = vunpack.c.l.b16 %v1479
    %v1519 = vunpack.c.l.b16 %v1480
    %v1520 = vunpack.c.l.b16 %v1481
    %v1521 = vunpack.c.l.b16 %v1482
    %v1522 = vunpack.c.l.b16 %v1483
    %v1523 = vunpack.c.l.b16 %v1484
    %v1524 = vpack.c.b16 %v1509, %v1508
    %v1525 = vpack.c.b16 %v1511, %v1510
    %v1526 = vpack.c.b16 %v1513, %v1512
    %v1527 = vpack.c.b16 %v1515, %v1514
    %v1528 = vpack.c.b16 %v1517, %v1516
    %v1529 = vpack.c.b16 %v1519, %v1518
    %v1530 = vpack.c.b16 %v1521, %v1520
    %v1531 = vpack.c.b16 %v1523, %v1522
    %1540 = vmatprep.subr.bf16.mxu0 0
    %1541 = vmatpush1.bf16.msra.mxu0 %v1524
    %1542 = vmatprep.subr.bf16.mxu0 0
    %1543 = vmatpush1.bf16.msra.mxu0 %v1525
    %1544 = vmatprep.subr.bf16.mxu0 0
    %1545 = vmatpush1.bf16.msra.mxu0 %v1526
    %1546 = vmatprep.subr.bf16.mxu0 0
    %1547 = vmatpush1.bf16.msra.mxu0 %v1527
    %1548 = vmatprep.subr.bf16.mxu0 0
    %1549 = vmatpush1.bf16.msra.mxu0 %v1528
    %1550 = vmatprep.subr.bf16.mxu0 0
    %1551 = vmatpush1.bf16.msra.mxu0 %v1529
    %1552 = vmatprep.subr.bf16.mxu0 0
    %1553 = vmatpush1.bf16.msra.mxu0 %v1530
    %1554 = vmatprep.subr.bf16.mxu0 0
    %1555 = vmatpush1.bf16.msra.mxu0 %v1531
    %1556 = vmatprep.subr.bf16.mxu0 0
    %1557 = vmatpush1.bf16.msra.mxu0 0
    %1558 = vmatprep.subr.bf16.mxu0 0
    %1559 = vmatpush1.bf16.msra.mxu0 0
    %1560 = vmatprep.subr.bf16.mxu0 0
    %1561 = vmatpush1.bf16.msra.mxu0 0
    %1562 = vmatprep.subr.bf16.mxu0 0
    %1563 = vmatpush1.bf16.msra.mxu0 0
    %1564 = vmatprep.subr.bf16.mxu0 0
    %1565 = vmatpush1.bf16.msra.mxu0 0
    %1566 = vmatprep.subr.bf16.mxu0 0
    %1567 = vmatpush1.bf16.msra.mxu0 0
    %1568 = vmatprep.subr.bf16.mxu0 0
    %1569 = vmatpush1.bf16.msra.mxu0 0
    %1570 = vmatprep.subr.bf16.mxu0 0
    %1571 = vmatpush1.bf16.msra.mxu0 0
    %1572 = vmatprep.mubr.bf16.mxu0 0
    %1573 = vmatmul.mubr.bf16.gmra.mrb[0].mxu0 %v1468
    %v1574 = vpop.f32.mrb[0].mxu0
    %v1575 = vadd.f32 %v1490, %v1574
    %v1576 = vpop.f32.mrb[0].mxu0
    %v1577 = vpop.f32.mrb[0].mxu0
    %v1578 = vadd.f32 %v1490, %v1577
    %v1579 = vpop.f32.mrb[0].mxu0
    %1580 = vdwg.mxu0
    %v1581 = vmax.f32 %v1575, 0.0
    %v1582 = vmax.f32 %v1578, 0.0
    %v1583 = vlaneseq
    %v1584 = vshrl.u32 %v1583, 7
    %vm1585 = vcmp.lt.s32.totalorder %v1584, 6
    %v1586 = vsel %vm1585, 1, 0
    %v1587 = vcvt.s32.f32 %v1586
    %v1588 = vmul.f32 %v1581, %v1587
    %v1589 = vmul.f32 %v1582, %v1587
    %v1590 = vrot.slane %v1588, 4
    %v1591 = vadd.f32 %v1588, %v1590
    %v1592 = vrot.slane %v1591, 2
    %v1593 = vadd.f32 %v1591, %v1592
    %v1594 = vrot.slane %v1593, 1
    %v1595 = vadd.f32 %v1593, %v1594
    %v1596 = vrot.slane %v1589, 4
    %v1597 = vadd.f32 %v1589, %v1596
    %v1598 = vrot.slane %v1597, 2
    %v1599 = vadd.f32 %v1597, %v1598
    %v1600 = vrot.slane %v1599, 1
    %v1601 = vadd.f32 %v1599, %v1600
    %v1602 = vmul.f32 %v1595, 0.16666667
    %v1603 = vmul.f32 %v1601, 0.16666667
    %vm1606 = vcmask 1041409
    %v1607 = vsel %vm1606, %v1603, %v1602
    %1609 = vst [vmem:[#allocation2] sm:$0x3] %v1607
    // Predicated region
    $region26: #{tpu_custom_call.1} parent=1 // pred_check
      _
    $region27: #{tpu_custom_call.1} parent=1 // pred_check_branch
      %1611 = sbr.rel (0) target = $region29
    $region28: #{tpu_custom_call.1} parent=1 // pred_region
      %s1613 = ssub.s32 32, 32
      %1614 = vsyncadd [#allocation3], %s1613
      %s1616 = sshll.u32 [#allocation2], 4
      %s1617 = int_to_ptr.vmem [resolvable:$true] %s1616
      %1619 = dma.vmem_to_hbm [thread:$0]  %s1617, 32, %s6, [#allocation3]
    $region29: #{tpu_custom_call.1} parent=1 // pred_fallthru
      _
    // Predicated region
    $region30: #{tpu_custom_call.1} parent=1 // pred_check
      _
    $region31: #{tpu_custom_call.1} parent=1 // pred_check_branch
      %1621 = sbr.rel (0) target = $region33
    $region32: #{tpu_custom_call.1} parent=1 // pred_region
      %1622 = dma.done [#allocation3], 32
    $region33: #{tpu_custom_call.1} parent=1 // pred_fallthru
      _
    %1623 = vsyncpa [#allocation3], 1

</llo_original>
